<compile_context>
chip_gen: v7x
topology: tpu7x:2x2x1
jax: 0.10.0
libtpu: 0.0.40
codegen_flags: <defaults>
</compile_context>

<pallas_src>
import jax
import jax.numpy as jnp
from jax.experimental import pallas as pl
from jax.experimental.pallas import tpu as pltpu

_EPS_BN = 1e-5      # PyTorch BatchNorm2d default eps
_EPS_NORM = 1e-12   # PyTorch F.normalize default eps


def _round_up(x, m):
    return (x + m - 1) // m * m


def _choose_block_rows(rows, width_elems, itemsize,
                       target_bytes=2 << 20, max_rows=4096):
    """Pick a row tile ~target_bytes wide, multiple of 8, >=2 grid steps if possible."""
    per_row = max(1, width_elems * itemsize)
    br = max(8, min(max_rows, target_bytes // per_row))
    br = max(8, (br // 8) * 8)
    rows8 = _round_up(rows, 8)
    if br >= rows8:
        if rows > 8:
            # Split into (at least) 2 blocks so v7x's two TensorCores both work.
            br = min(rows8, max(8, _round_up(rows, 16) // 2))
        else:
            br = rows8
    return br


# ---------------------------------------------------------------------------
# Kernels
# ---------------------------------------------------------------------------
def _proj1_kernel(x_ref, w_ref, b_ref, o_ref):
    x = x_ref[...].astype(jnp.float32)
    y = jnp.dot(x, w_ref[...].astype(jnp.float32),
                preferred_element_type=jnp.float32)
    y = y + b_ref[...]
    ssq = jnp.sum(y * y, axis=-1, keepdims=True)
    inv = 1.0 / jnp.maximum(jnp.sqrt(ssq), _EPS_NORM)
    o_ref[...] = (y * inv).astype(o_ref.dtype)


def _proj2_kernel(x_ref, w1_ref, b1_ref, s_ref, t_ref, w2_ref, b2_ref, o_ref):
    x = x_ref[...].astype(jnp.float32)
    h = jnp.dot(x, w1_ref[...].astype(jnp.float32),
                preferred_element_type=jnp.float32)
    h = h + b1_ref[...]
    h = h * s_ref[...] + t_ref[...]          # folded BatchNorm (inference)
    h = jnp.maximum(h, 0.0)                  # ReLU
    y = jnp.dot(h, w2_ref[...].astype(jnp.float32),
                preferred_element_type=jnp.float32)
    y = y + b2_ref[...]
    ssq = jnp.sum(y * y, axis=-1, keepdims=True)
    inv = 1.0 / jnp.maximum(jnp.sqrt(ssq), _EPS_NORM)
    o_ref[...] = (y * inv).astype(o_ref.dtype)


# ---------------------------------------------------------------------------
# Wrapper
# ---------------------------------------------------------------------------
def projection_head_forward(x, params, num_proj_layer):
    """x: (N, C_in, H, W) NCHW float array. Returns (N, proj_dim, H, W)."""
    N, C, H, W = x.shape
    rows = N * H * W
    f32 = jnp.float32

    if num_proj_layer == 1:
        P = params["w"].shape[0]
    elif num_proj_layer == 2:
        P = params["w2"].shape[0]
    else:
        raise NotImplementedError("Only support 1- or 2-layer now")

    Cp = _round_up(C, 128)
    Pp = _round_up(P, 128)

    # Flatten NCHW -> (rows, C) with channels last, zero-pad channels & rows.
    x_mat = jnp.transpose(x, (0, 2, 3, 1)).reshape(rows, C).astype(f32)

    block_rows = _choose_block_rows(rows, max(Cp, Pp), 4)
    rows_p = _round_up(rows, block_rows)
    x_mat = jnp.pad(x_mat, ((0, rows_p - rows), (0, Cp - C)))

    grid = (rows_p // block_rows,)
    x_spec = pl.BlockSpec((block_rows, Cp), lambda i: (i, 0))
    out_spec = pl.BlockSpec((block_rows, Pp), lambda i: (i, 0))

    def _resident(shape):
        return pl.BlockSpec(shape, lambda i: (0, 0))

    cparams = pltpu.CompilerParams(dimension_semantics=("parallel",))

    if num_proj_layer == 1:
        w = jnp.zeros((Cp, Pp), f32).at[:C, :P].set(params["w"].astype(f32).T)
        b = jnp.zeros((1, Pp), f32).at[:, :P].set(params["b"].astype(f32))
        flops = 2 * rows_p * Cp * Pp
        bytes_acc = 4 * (rows_p * Cp + Cp * Pp + Pp + rows_p * Pp)
        out = pl.pallas_call(
            _proj1_kernel,
            out_shape=jax.ShapeDtypeStruct((rows_p, Pp), f32),
            grid=grid,
            in_specs=[x_spec, _resident((Cp, Pp)), _resident((1, Pp))],
            out_specs=out_spec,
            compiler_params=cparams,
            cost_estimate=pl.CostEstimate(flops=flops, transcendentals=0,
                                          bytes_accessed=bytes_acc),
        )(x_mat, w, b)
    else:
        # Fold BatchNorm (inference mode) into per-channel scale/shift.
        scale = params["gamma"].astype(f32) / jnp.sqrt(
            params["running_var"].astype(f32) + _EPS_BN)
        shift = params["beta"].astype(f32) - params["running_mean"].astype(f32) * scale

        w1 = jnp.zeros((Cp, Cp), f32).at[:C, :C].set(params["w1"].astype(f32).T)
        b1 = jnp.zeros((1, Cp), f32).at[:, :C].set(params["b1"].astype(f32))
        s = jnp.zeros((1, Cp), f32).at[:, :C].set(scale)
        t = jnp.zeros((1, Cp), f32).at[:, :C].set(shift)
        w2 = jnp.zeros((Cp, Pp), f32).at[:C, :P].set(params["w2"].astype(f32).T)
        b2 = jnp.zeros((1, Pp), f32).at[:, :P].set(params["b2"].astype(f32))

        flops = 2 * rows_p * (Cp * Cp + Cp * Pp)
        bytes_acc = 4 * (rows_p * Cp + Cp * Cp + Cp * Pp + 4 * Cp + Pp
                         + rows_p * Pp)
        out = pl.pallas_call(
            _proj2_kernel,
            out_shape=jax.ShapeDtypeStruct((rows_p, Pp), f32),
            grid=grid,
            in_specs=[x_spec,
                      _resident((Cp, Cp)), _resident((1, Cp)),
                      _resident((1, Cp)), _resident((1, Cp)),
                      _resident((Cp, Pp)), _resident((1, Pp))],
            out_specs=out_spec,
            compiler_params=cparams,
            cost_estimate=pl.CostEstimate(flops=flops, transcendentals=0,
                                          bytes_accessed=bytes_acc),
        )(x_mat, w1, b1, s, t, w2, b2)

    out = out[:rows, :P].reshape(N, H, W, P)
    return jnp.transpose(out, (0, 3, 1, 2)).astype(x.dtype)


# ---------------------------------------------------------------------------
# Pure-JAX reference (mirrors the PyTorch module, BN in eval mode)
# ---------------------------------------------------------------------------
def _ref_forward(x, params, num_proj_layer):
    if num_proj_layer == 1:
        y = jnp.einsum("oc,nchw->nohw", params["w"], x) \
            + params["b"][None, :, None, None]
    else:
        h = jnp.einsum("oc,nchw->nohw", params["w1"], x) \
            + params["b1"][None, :, None, None]
        scale = params["gamma"] / jnp.sqrt(params["running_var"] + _EPS_BN)
        shift = params["beta"] - params["running_mean"] * scale
        h = h * scale[None, :, None, None] + shift[None, :, None, None]
        h = jnp.maximum(h, 0.0)
        y = jnp.einsum("oc,nchw->nohw", params["w2"], h) \
            + params["b2"][None, :, None, None]
    norm = jnp.sqrt(jnp.sum(y * y, axis=1, keepdims=True))
    return y / jnp.maximum(norm, _EPS_NORM)


if __name__ == "__main__":
    key = jax.random.PRNGKey(0)
    N, C, H, W, P = 2, 4, 16, 16, 8
    ks = jax.random.split(key, 10)

    x = jax.random.normal(ks[0], (N, C, H, W), dtype=jnp.float32)

    # --- 2-layer head: Conv1x1 -> BN -> ReLU -> Conv1x1 -> L2 normalize ---
    params2 = {
        "w1": jax.random.normal(ks[1], (C, C), jnp.float32) * 0.5,
        "b1": jax.random.normal(ks[2], (C,), jnp.float32) * 0.1,
        "gamma": 1.0 + 0.1 * jax.random.normal(ks[3], (C,), jnp.float32),
        "beta": 0.1 * jax.random.normal(ks[4], (C,), jnp.float32),
        "running_mean": 0.1 * jax.random.normal(ks[5], (C,), jnp.float32),
        "running_var": 1.0 + 0.1 * jax.nn.softplus(
            jax.random.normal(ks[6], (C,), jnp.float32)),
        "w2": jax.random.normal(ks[7], (P, C), jnp.float32) * 0.5,
        "b2": jax.random.normal(ks[8], (P,), jnp.float32) * 0.1,
    }
    y2 = jax.block_until_ready(projection_head_forward(x, params2, 2))
    r2 = _ref_forward(x, params2, 2)
    assert y2.shape == (N, P, H, W) and y2.dtype == x.dtype
    assert jnp.allclose(y2, r2, atol=1e-5, rtol=1e-5)

    # --- 1-layer head: Conv1x1 -> L2 normalize ---
    params1 = {
        "w": jax.random.normal(ks[9], (P, C), jnp.float32) * 0.5,
        "b": 0.1 * jnp.arange(P, dtype=jnp.float32),
    }
    y1 = jax.block_until_ready(projection_head_forward(x, params1, 1))
    r1 = _ref_forward(x, params1, 1)
    assert y1.shape == (N, P, H, W) and y1.dtype == x.dtype
    assert jnp.allclose(y1, r1, atol=1e-5, rtol=1e-5)

    print("KERNEL_OK")
</pallas_src>

<mosaic_0001>
module attributes {stable_mosaic.version = 11 : i64} {
  func.func @_proj2_kernel(%arg0: i32, %arg1: memref<256x128xf32, #tpu.memory_space<vmem>>, %arg2: memref<128x128xf32, #tpu.memory_space<vmem>>, %arg3: memref<1x128xf32, #tpu.memory_space<vmem>>, %arg4: memref<1x128xf32, #tpu.memory_space<vmem>>, %arg5: memref<1x128xf32, #tpu.memory_space<vmem>>, %arg6: memref<128x128xf32, #tpu.memory_space<vmem>>, %arg7: memref<1x128xf32, #tpu.memory_space<vmem>>, %arg8: memref<256x128xf32, #tpu.memory_space<vmem>>) attributes {dimension_semantics = [#tpu.dimension_semantics<parallel>], iteration_bounds = array<i64: 2>, scalar_prefetch = 0 : i64, scratch_operands = 0 : i64, tpu.core_type = #tpu.core_type<tc>, window_params = [{transform_indices = @transform_0, window_bounds = array<i64: 256, 128>}, {pipeline_mode = #tpu.pipeline_mode<synchronous>, transform_indices = @transform_1, window_bounds = array<i64: 128, 128>}, {pipeline_mode = #tpu.pipeline_mode<synchronous>, transform_indices = @transform_2, window_bounds = array<i64: 1, 128>}, {pipeline_mode = #tpu.pipeline_mode<synchronous>, transform_indices = @transform_3, window_bounds = array<i64: 1, 128>}, {pipeline_mode = #tpu.pipeline_mode<synchronous>, transform_indices = @transform_4, window_bounds = array<i64: 1, 128>}, {pipeline_mode = #tpu.pipeline_mode<synchronous>, transform_indices = @transform_5, window_bounds = array<i64: 128, 128>}, {pipeline_mode = #tpu.pipeline_mode<synchronous>, transform_indices = @transform_6, window_bounds = array<i64: 1, 128>}, {transform_indices = @transform_7, window_bounds = array<i64: 256, 128>}]} {
    %c0 = arith.constant 0 : index
    %c0_0 = arith.constant 0 : index
    %0 = vector.load %arg1[%c0, %c0_0] : memref<256x128xf32, #tpu.memory_space<vmem>>, vector<256x128xf32>
    %c0_1 = arith.constant 0 : index
    %c0_2 = arith.constant 0 : index
    %1 = vector.load %arg2[%c0_1, %c0_2] : memref<128x128xf32, #tpu.memory_space<vmem>>, vector<128x128xf32>
    %cst = arith.constant dense<0.000000e+00> : vector<256x128xf32>
    %2 = tpu.matmul %0, %1, %cst {dimension_numbers = #tpu.dot_dimension_numbers<[1], [0], [0], [1], [0, 0, 1, 1], [], []>} : vector<256x128xf32>, vector<128x128xf32>, vector<256x128xf32> -> vector<256x128xf32>
    %c0_3 = arith.constant 0 : index
    %c0_4 = arith.constant 0 : index
    %3 = vector.load %arg3[%c0_3, %c0_4] : memref<1x128xf32, #tpu.memory_space<vmem>>, vector<1x128xf32>
    %4 = vector.broadcast %3 : vector<1x128xf32> to vector<256x128xf32>
    %5 = arith.addf %2, %4 : vector<256x128xf32>
    %c0_5 = arith.constant 0 : index
    %c0_6 = arith.constant 0 : index
    %6 = vector.load %arg4[%c0_5, %c0_6] : memref<1x128xf32, #tpu.memory_space<vmem>>, vector<1x128xf32>
    %7 = vector.broadcast %6 : vector<1x128xf32> to vector<256x128xf32>
    %8 = arith.mulf %5, %7 : vector<256x128xf32>
    %c0_7 = arith.constant 0 : index
    %c0_8 = arith.constant 0 : index
    %9 = vector.load %arg5[%c0_7, %c0_8] : memref<1x128xf32, #tpu.memory_space<vmem>>, vector<1x128xf32>
    %10 = vector.broadcast %9 : vector<1x128xf32> to vector<256x128xf32>
    %11 = arith.addf %8, %10 : vector<256x128xf32>
    %cst_9 = arith.constant 0.000000e+00 : f32
    %12 = vector.broadcast %cst_9 : f32 to vector<256x128xf32>
    %13 = arith.maximumf %11, %12 : vector<256x128xf32>
    %c0_10 = arith.constant 0 : index
    %c0_11 = arith.constant 0 : index
    %14 = vector.load %arg6[%c0_10, %c0_11] : memref<128x128xf32, #tpu.memory_space<vmem>>, vector<128x128xf32>
    %cst_12 = arith.constant dense<0.000000e+00> : vector<256x128xf32>
    %15 = tpu.matmul %13, %14, %cst_12 {dimension_numbers = #tpu.dot_dimension_numbers<[1], [0], [0], [1], [0, 0, 1, 1], [], []>} : vector<256x128xf32>, vector<128x128xf32>, vector<256x128xf32> -> vector<256x128xf32>
    %c0_13 = arith.constant 0 : index
    %c0_14 = arith.constant 0 : index
    %16 = vector.load %arg7[%c0_13, %c0_14] : memref<1x128xf32, #tpu.memory_space<vmem>>, vector<1x128xf32>
    %17 = vector.broadcast %16 : vector<1x128xf32> to vector<256x128xf32>
    %18 = arith.addf %15, %17 : vector<256x128xf32>
    %19 = arith.mulf %18, %18 : vector<256x128xf32>
    %cst_15 = arith.constant dense<0.000000e+00> : vector<256xf32>
    %20 = vector.multi_reduction <add>, %19, %cst_15 [1] : vector<256x128xf32> to vector<256xf32>
    %21 = vector.shape_cast %20 : vector<256xf32> to vector<256x1xf32>
    %22 = math.sqrt %21 : vector<256x1xf32>
    %cst_16 = arith.constant 9.99999996E-13 : f32
    %23 = vector.broadcast %cst_16 : f32 to vector<256x1xf32>
    %24 = arith.maximumf %22, %23 : vector<256x1xf32>
    %cst_17 = arith.constant 1.000000e+00 : f32
    %25 = vector.broadcast %cst_17 : f32 to vector<256x1xf32>
    %26 = arith.divf %25, %24 : vector<256x1xf32>
    %27 = vector.broadcast %26 : vector<256x1xf32> to vector<256x128xf32>
    %28 = arith.mulf %18, %27 : vector<256x128xf32>
    %c0_18 = arith.constant 0 : index
    %c0_19 = arith.constant 0 : index
    %29 = vector.load %arg8[%c0_18, %c0_19] : memref<256x128xf32, #tpu.memory_space<vmem>>, vector<256x128xf32>
    tpu.vector_store %arg8[%c0_18, %c0_19], %28 {strides = array<i32>} : memref<256x128xf32, #tpu.memory_space<vmem>>, vector<256x128xf32>,
    return
  }
  func.func @transform_0(%arg0: i32) -> (i32, i32) {
    %c0_i32 = arith.constant 0 : i32
    %c0_i32_0 = arith.constant 0 : i32
    return %arg0, %c0_i32 : i32, i32
  }
  func.func @transform_1(%arg0: i32) -> (i32, i32) {
    %c0_i32 = arith.constant 0 : i32
    %c0_i32_0 = arith.constant 0 : i32
    %c0_i32_1 = arith.constant 0 : i32
    return %c0_i32, %c0_i32_0 : i32, i32
  }
  func.func @transform_2(%arg0: i32) -> (i32, i32) {
    %c0_i32 = arith.constant 0 : i32
    %c0_i32_0 = arith.constant 0 : i32
    %c0_i32_1 = arith.constant 0 : i32
    return %c0_i32, %c0_i32_0 : i32, i32
  }
  func.func @transform_3(%arg0: i32) -> (i32, i32) {
    %c0_i32 = arith.constant 0 : i32
    %c0_i32_0 = arith.constant 0 : i32
    %c0_i32_1 = arith.constant 0 : i32
    return %c0_i32, %c0_i32_0 : i32, i32
  }
  func.func @transform_4(%arg0: i32) -> (i32, i32) {
    %c0_i32 = arith.constant 0 : i32
    %c0_i32_0 = arith.constant 0 : i32
    %c0_i32_1 = arith.constant 0 : i32
    return %c0_i32, %c0_i32_0 : i32, i32
  }
  func.func @transform_5(%arg0: i32) -> (i32, i32) {
    %c0_i32 = arith.constant 0 : i32
    %c0_i32_0 = arith.constant 0 : i32
    %c0_i32_1 = arith.constant 0 : i32
    return %c0_i32, %c0_i32_0 : i32, i32
  }
  func.func @transform_6(%arg0: i32) -> (i32, i32) {
    %c0_i32 = arith.constant 0 : i32
    %c0_i32_0 = arith.constant 0 : i32
    %c0_i32_1 = arith.constant 0 : i32
    return %c0_i32, %c0_i32_0 : i32, i32
  }
  func.func @transform_7(%arg0: i32) -> (i32, i32) {
    %c0_i32 = arith.constant 0 : i32
    %c0_i32_0 = arith.constant 0 : i32
    return %arg0, %c0_i32 : i32, i32
  }
}

</mosaic_0001>

<llo_original>
// kernel: tpu_custom_call.1
$region0: #{tpu_custom_call.1}
  #allocation0 [shape = 'u32[]', space=smem, size = 0x4, offset = 0x4, fixed_abs, tag = 'smem constant byte address 0x4 - core index']
  #allocation1 [shape = 'u32[144,128]{1,0:T(1,128)}', space=vmem, size = 0x12000, scoped, tag = 'internal scratch']
  %s0 = inlined_call_operand.hbm [shape: f32[512,128], index: 0, kind: input, shape index: {}]
  %s1 = inlined_call_operand.hbm [shape: f32[128,128], index: 1, kind: input, shape index: {}]
  %s2 = inlined_call_operand.vmem [shape: f32[1,128], index: 2, kind: input, shape index: {}]
  %s3 = inlined_call_operand.vmem [shape: f32[1,128], index: 3, kind: input, shape index: {}]
  %s4 = inlined_call_operand.vmem [shape: f32[1,128], index: 4, kind: input, shape index: {}]
  %s5 = inlined_call_operand.hbm [shape: f32[128,128], index: 5, kind: input, shape index: {}]
  %s6 = inlined_call_operand.vmem [shape: f32[1,128], index: 6, kind: input, shape index: {}]
  %s7 = inlined_call_operand.hbm [shape: f32[512,128], index: 7, kind: output, shape index: {}]
  %s8 = sld [smem:[#allocation0]]
  $region73: #{tpu_custom_call.1} parent=0
    _
  %s10 = ssub.s32 1, %s8
  %s11 = scalar_select 0, %s10, %s8
  $region1: #{tpu_custom_call.1} parent=0
    #allocation2 [shape = 'u8[262144]{0}', space=vmem, size = 0x40000, scoped, tag = 'input window, operand 0']
    #allocation3 [shape = 's32[2]{0}', space=sflag, size = 0x8, scoped, tag = 'scoped memory for tpu_custom_call.1']
    #allocation4 [shape = 's32[2]{0}', space=sflag, size = 0x8, scoped, tag = 'scoped memory for tpu_custom_call.1']
    #allocation5 [shape = 'u8[65536]{0}', space=vmem, size = 0x10000, scoped, tag = 'input window, operand 1, single buffered']
    #allocation6 [shape = 's32[1]{0}', space=sflag, size = 0x4, scoped, tag = 'scoped memory for tpu_custom_call.1']
    #allocation7 [shape = 'u8[65536]{0}', space=vmem, size = 0x10000, scoped, tag = 'input window, operand 5, single buffered']
    #allocation8 [shape = 'u8[262144]{0}', space=vmem, size = 0x40000, scoped, tag = 'output window, operand 0']
    %12 = vsyncpa [#allocation3], 0
    %s13 = scalar_lea.sflag [#allocation3], 1
    %14 = vsyncpa %s13, 0
    %15 = vsyncpa [#allocation6], 0
    %16 = vsyncpa [#allocation4], 0
    %s17 = scalar_lea.sflag [#allocation4], 1
    %18 = vsyncpa %s17, 0
    loop: start=0, step=1, limit=4
    $region2: #{tpu_custom_call.1} parent=1 // loop_pre_header
      _
    $region3: #{tpu_custom_call.1} parent=1 // loop_header
      %s20 = sphi 0, %s24
      %p21 = scmp.ge.s32.totalorder %s20, 4
      %s30 = sphi 0, %s32
      %s33 = sphi 0, %s30
      %s34 = sphi 0, %s33
      %s50 = sphi 0, %s34
      %s54 = sphi 0, %s54
      %s56 = sphi 0, %s54
      %s57 = sphi 0, %s56
      %s71 = sphi 0, %s57
      %s75 = sphi 0, %s75
      %s77 = sphi 0, %s75
      %s78 = sphi 0, %s77
      %s92 = sphi 0, %s78
      %s96 = sphi 0, %s96
      %s98 = sphi 0, %s96
      %s99 = sphi 0, %s98
      %s113 = sphi 0, %s99
      %s117 = sphi 0, %s117
      %s119 = sphi 0, %s117
      %s120 = sphi 0, %s119
      %s134 = sphi 0, %s120
      %s138 = sphi 0, %s138
      %s140 = sphi 0, %s138
      %s141 = sphi 0, %s140
      %s155 = sphi 0, %s141
      %s159 = sphi 0, %s159
      %s161 = sphi 0, %s159
      %s162 = sphi 0, %s161
      %s176 = sphi 0, %s162
      %s182 = sphi 0, %s184
      %s185 = sphi 0, %s182
      %s186 = sphi 0, %s185
      %s202 = sphi 0, %s186
    $region4: #{tpu_custom_call.1} parent=1 // loop_header_branch
      %23 = sbr.rel (%p21) target = $region8
    $region5: #{tpu_custom_call.1} parent=1 // loop_body
      %s25 = ssub.s32 %s20, 1
      %s26 = ssub.s32 %s20, 2
      %s27 = sadd.s32 %s20, 1
      %s28 = ssub.s32 %s20, %s27
      %p29 = scmp.eq.s32.totalorder %s28, 0
      %s31 = sadd.s32 %s30, 1
      %s32 = scalar_select %p29, %s30, %s31
      %p35 = pneg %p29
      %p36 = scmp.eq.s32.totalorder %s20, 1
      %p37 = por %p35, %p36
      %p38 = scmp.ne.s32.totalorder %s30, %s33
      %p39 = scmp.eq.s32.totalorder %s20, 0
      %p40 = por %p38, %p39
      %p41 = scmp.ne.s32.totalorder %s30, %s33
      %p42 = scmp.eq.s32.totalorder %s25, 1
      %p43 = por %p41, %p42
      %p44 = scmp.ne.s32.totalorder %s33, %s34
      %p45 = scmp.eq.s32.totalorder %s25, 0
      %p46 = por %p44, %p45
      %p47 = scmp.ne.s32.totalorder %s33, %s34
      %p48 = scmp.eq.s32.totalorder %s26, 1
      %p49 = por %p47, %p48
      %p51 = scmp.ne.s32.totalorder %s34, %s50
      %p52 = scmp.eq.s32.totalorder %s26, 0
      %p53 = por %p51, %p52
      %s55 = sadd.s32 %s54, 1
      %p58 = scmp.eq.s32.totalorder %s20, 1
      %p59 = scmp.ne.s32.totalorder %s54, %s56
      %p60 = scmp.eq.s32.totalorder %s20, 0
      %p61 = por %p59, %p60
      %p62 = scmp.ne.s32.totalorder %s54, %s56
      %p63 = scmp.eq.s32.totalorder %s25, 1
      %p64 = por %p62, %p63
      %p65 = scmp.ne.s32.totalorder %s56, %s57
      %p66 = scmp.eq.s32.totalorder %s25, 0
      %p67 = por %p65, %p66
      %p68 = scmp.ne.s32.totalorder %s56, %s57
      %p69 = scmp.eq.s32.totalorder %s26, 1
      %p70 = por %p68, %p69
      %p72 = scmp.ne.s32.totalorder %s57, %s71
      %p73 = scmp.eq.s32.totalorder %s26, 0
      %p74 = por %p72, %p73
      %s76 = sadd.s32 %s75, 1
      %p79 = scmp.eq.s32.totalorder %s20, 1
      %p80 = scmp.ne.s32.totalorder %s75, %s77
      %p81 = scmp.eq.s32.totalorder %s20, 0
      %p82 = por %p80, %p81
      %p83 = scmp.ne.s32.totalorder %s75, %s77
      %p84 = scmp.eq.s32.totalorder %s25, 1
      %p85 = por %p83, %p84
      %p86 = scmp.ne.s32.totalorder %s77, %s78
      %p87 = scmp.eq.s32.totalorder %s25, 0
      %p88 = por %p86, %p87
      %p89 = scmp.ne.s32.totalorder %s77, %s78
      %p90 = scmp.eq.s32.totalorder %s26, 1
      %p91 = por %p89, %p90
      %p93 = scmp.ne.s32.totalorder %s78, %s92
      %p94 = scmp.eq.s32.totalorder %s26, 0
      %p95 = por %p93, %p94
      %s97 = sadd.s32 %s96, 1
      %p100 = scmp.eq.s32.totalorder %s20, 1
      %p101 = scmp.ne.s32.totalorder %s96, %s98
      %p102 = scmp.eq.s32.totalorder %s20, 0
      %p103 = por %p101, %p102
      %p104 = scmp.ne.s32.totalorder %s96, %s98
      %p105 = scmp.eq.s32.totalorder %s25, 1
      %p106 = por %p104, %p105
      %p107 = scmp.ne.s32.totalorder %s98, %s99
      %p108 = scmp.eq.s32.totalorder %s25, 0
      %p109 = por %p107, %p108
      %p110 = scmp.ne.s32.totalorder %s98, %s99
      %p111 = scmp.eq.s32.totalorder %s26, 1
      %p112 = por %p110, %p111
      %p114 = scmp.ne.s32.totalorder %s99, %s113
      %p115 = scmp.eq.s32.totalorder %s26, 0
      %p116 = por %p114, %p115
      %s118 = sadd.s32 %s117, 1
      %p121 = scmp.eq.s32.totalorder %s20, 1
      %p122 = scmp.ne.s32.totalorder %s117, %s119
      %p123 = scmp.eq.s32.totalorder %s20, 0
      %p124 = por %p122, %p123
      %p125 = scmp.ne.s32.totalorder %s117, %s119
      %p126 = scmp.eq.s32.totalorder %s25, 1
      %p127 = por %p125, %p126
      %p128 = scmp.ne.s32.totalorder %s119, %s120
      %p129 = scmp.eq.s32.totalorder %s25, 0
      %p130 = por %p128, %p129
      %p131 = scmp.ne.s32.totalorder %s119, %s120
      %p132 = scmp.eq.s32.totalorder %s26, 1
      %p133 = por %p131, %p132
      %p135 = scmp.ne.s32.totalorder %s120, %s134
      %p136 = scmp.eq.s32.totalorder %s26, 0
      %p137 = por %p135, %p136
      %s139 = sadd.s32 %s138, 1
      %p142 = scmp.eq.s32.totalorder %s20, 1
      %p143 = scmp.ne.s32.totalorder %s138, %s140
      %p144 = scmp.eq.s32.totalorder %s20, 0
      %p145 = por %p143, %p144
      %p146 = scmp.ne.s32.totalorder %s138, %s140
      %p147 = scmp.eq.s32.totalorder %s25, 1
      %p148 = por %p146, %p147
      %p149 = scmp.ne.s32.totalorder %s140, %s141
      %p150 = scmp.eq.s32.totalorder %s25, 0
      %p151 = por %p149, %p150
      %p152 = scmp.ne.s32.totalorder %s140, %s141
      %p153 = scmp.eq.s32.totalorder %s26, 1
      %p154 = por %p152, %p153
      %p156 = scmp.ne.s32.totalorder %s141, %s155
      %p157 = scmp.eq.s32.totalorder %s26, 0
      %p158 = por %p156, %p157
      %s160 = sadd.s32 %s159, 1
      %p163 = scmp.eq.s32.totalorder %s20, 1
      %p164 = scmp.ne.s32.totalorder %s159, %s161
      %p165 = scmp.eq.s32.totalorder %s20, 0
      %p166 = por %p164, %p165
      %p167 = scmp.ne.s32.totalorder %s159, %s161
      %p168 = scmp.eq.s32.totalorder %s25, 1
      %p169 = por %p167, %p168
      %p170 = scmp.ne.s32.totalorder %s161, %s162
      %p171 = scmp.eq.s32.totalorder %s25, 0
      %p172 = por %p170, %p171
      %p173 = scmp.ne.s32.totalorder %s161, %s162
      %p174 = scmp.eq.s32.totalorder %s26, 1
      %p175 = por %p173, %p174
      %p177 = scmp.ne.s32.totalorder %s162, %s176
      %p178 = scmp.eq.s32.totalorder %s26, 0
      %p179 = por %p177, %p178
      %s180 = ssub.s32 %s20, %s27
      %p181 = scmp.eq.s32.totalorder %s180, 0
      %s183 = sadd.s32 %s182, 1
      %s184 = scalar_select %p181, %s182, %s183
      %p187 = pneg %p181
      %p188 = scmp.eq.s32.totalorder %s20, 1
      %p189 = por %p187, %p188
      %p190 = scmp.ne.s32.totalorder %s182, %s185
      %p191 = scmp.eq.s32.totalorder %s20, 0
      %p192 = por %p190, %p191
      %p193 = scmp.ne.s32.totalorder %s182, %s185
      %p194 = scmp.eq.s32.totalorder %s25, 1
      %p195 = por %p193, %p194
      %p196 = scmp.ne.s32.totalorder %s185, %s186
      %p197 = scmp.eq.s32.totalorder %s25, 0
      %p198 = por %p196, %p197
      %p199 = scmp.ne.s32.totalorder %s185, %s186
      %p200 = scmp.eq.s32.totalorder %s26, 1
      %p201 = por %p199, %p200
      %p203 = scmp.ne.s32.totalorder %s186, %s202
      %p204 = scmp.eq.s32.totalorder %s26, 0
      %p205 = por %p203, %p204
      %p206 = scmp.le.s32.totalorder 1, %s20
      %p207 = scmp.lt.s32.totalorder %s20, 3
      %p208 = pnand %p206, %p207
      %p209 = pneg %p208
      // Predicated region
      $region9: #{tpu_custom_call.1} parent=5 // pred_check
        _
      $region10: #{tpu_custom_call.1} parent=5 // pred_check_branch
        %211 = sbr.rel (%p208) target = $region12
      $region11: #{tpu_custom_call.1} parent=5 // pred_region
        %s212 = ssub.s32 %s20, 1
        // Predicated region
        $region13: #{tpu_custom_call.1} parent=11 // pred_check
          %p213 = pneg %p67
        $region14: #{tpu_custom_call.1} parent=11 // pred_check_branch
          %215 = sbr.rel (%p213) target = $region16
        $region15: #{tpu_custom_call.1} parent=11 // pred_region
          %s217 = ssub.s32 2048, 2048
          %218 = vsyncadd [#allocation6], %s217
          %s219 = sshll.u32 [#allocation5], 4
          %s220 = int_to_ptr.vmem [resolvable:$true] %s219
          %225 = dma.hbm_to_vmem [thread:$0]  %s1, 2048, %s220, [#allocation6], 128, 128, 8
        $region16: #{tpu_custom_call.1} parent=11 // pred_fallthru
          _
        // Predicated region
        $region17: #{tpu_custom_call.1} parent=11 // pred_check
          %p226 = pneg %p88
        $region18: #{tpu_custom_call.1} parent=11 // pred_check_branch
          %228 = sbr.rel (%p226) target = $region20
        $region19: #{tpu_custom_call.1} parent=11 // pred_region
          _
        $region20: #{tpu_custom_call.1} parent=11 // pred_fallthru
          _
        // Predicated region
        $region21: #{tpu_custom_call.1} parent=11 // pred_check
          %p229 = pneg %p109
        $region22: #{tpu_custom_call.1} parent=11 // pred_check_branch
          %231 = sbr.rel (%p229) target = $region24
        $region23: #{tpu_custom_call.1} parent=11 // pred_region
          _
        $region24: #{tpu_custom_call.1} parent=11 // pred_fallthru
          _
        // Predicated region
        $region25: #{tpu_custom_call.1} parent=11 // pred_check
          %p232 = pneg %p130
        $region26: #{tpu_custom_call.1} parent=11 // pred_check_branch
          %234 = sbr.rel (%p232) target = $region28
        $region27: #{tpu_custom_call.1} parent=11 // pred_region
          _
        $region28: #{tpu_custom_call.1} parent=11 // pred_fallthru
          _
        // Predicated region
        $region29: #{tpu_custom_call.1} parent=11 // pred_check
          %p235 = pneg %p151
        $region30: #{tpu_custom_call.1} parent=11 // pred_check_branch
          %237 = sbr.rel (%p235) target = $region32
        $region31: #{tpu_custom_call.1} parent=11 // pred_region
          %s239 = ssub.s32 2048, 2048
          %240 = vsyncadd [#allocation6], %s239
          %s241 = sshll.u32 [#allocation7], 4
          %s242 = int_to_ptr.vmem [resolvable:$true] %s241
          %247 = dma.hbm_to_vmem [thread:$0]  %s5, 2048, %s242, [#allocation6], 128, 128, 8
        $region32: #{tpu_custom_call.1} parent=11 // pred_fallthru
          _
        // Predicated region
        $region33: #{tpu_custom_call.1} parent=11 // pred_check
          %p248 = pneg %p172
        $region34: #{tpu_custom_call.1} parent=11 // pred_check_branch
          %250 = sbr.rel (%p248) target = $region36
        $region35: #{tpu_custom_call.1} parent=11 // pred_region
          _
        $region36: #{tpu_custom_call.1} parent=11 // pred_fallthru
          _
      $region12: #{tpu_custom_call.1} parent=5 // pred_fallthru
        _
      %p251 = scmp.lt.s32.totalorder %s20, 2
      // Predicated region
      $region37: #{tpu_custom_call.1} parent=5 // pred_check
        %p252 = pneg %p251
      $region38: #{tpu_custom_call.1} parent=5 // pred_check_branch
        %254 = sbr.rel (%p252) target = $region40
      $region39: #{tpu_custom_call.1} parent=5 // pred_region
        // Predicated region
        $region41: #{tpu_custom_call.1} parent=39 // pred_check
          %p255 = pneg %p40
        $region42: #{tpu_custom_call.1} parent=39 // pred_check_branch
          %257 = sbr.rel (%p255) target = $region44
        $region43: #{tpu_custom_call.1} parent=39 // pred_region
          %s258 = sand.u32 %s30, 1
          %s259 = scalar_lea.sflag [#allocation3], %s258
          %s260 = sand.u32 %s30, 1
          %s261 = smul.addr %s260, 256
          %s262 = scalar_lea.vmem [#allocation2], %s261
          %s263 = smul.u32 32, %s20
          %s265 = ssub.s32 4096, 4096
          %266 = vsyncadd %s259, %s265
          %s267 = smul.addr %s263, 128
          %s268 = scalar_lea.hbm %s0, %s267
          %s269 = sshll.u32 %s262, 4
          %s270 = int_to_ptr.vmem [resolvable:$true] %s269
          %275 = dma.hbm_to_vmem [thread:$0]  %s268, 4096, %s270, %s259, 128, 128, 8
        $region44: #{tpu_custom_call.1} parent=39 // pred_fallthru
          _
      $region40: #{tpu_custom_call.1} parent=5 // pred_fallthru
        _
      %p276 = scmp.le.s32.totalorder 1, %s20
      %p277 = scmp.lt.s32.totalorder %s20, 3
      %p278 = pnand %p276, %p277
      %p279 = pneg %p278
      // Predicated region
      $region45: #{tpu_custom_call.1} parent=5 // pred_check
        _
      $region46: #{tpu_custom_call.1} parent=5 // pred_check_branch
        %281 = sbr.rel (%p278) target = $region48
      $region47: #{tpu_custom_call.1} parent=5 // pred_region
        %s282 = ssub.s32 %s20, 1
        %s283 = sand.u32 %s33, 1
        %s284 = scalar_lea.sflag [#allocation3], %s283
        %s285 = sand.u32 %s33, 1
        %s286 = smul.addr %s285, 256
        %s287 = scalar_lea.vmem [#allocation2], %s286
        // Predicated region
        $region49: #{tpu_custom_call.1} parent=47 // pred_check
          %p288 = pneg %p46
        $region50: #{tpu_custom_call.1} parent=47 // pred_check_branch
          %290 = sbr.rel (%p288) target = $region52
        $region51: #{tpu_custom_call.1} parent=47 // pred_region
          %291 = dma.done %s284, 4096
        $region52: #{tpu_custom_call.1} parent=47 // pred_fallthru
          _
        // Predicated region
        $region53: #{tpu_custom_call.1} parent=47 // pred_check
          %p292 = pneg %p67
        $region54: #{tpu_custom_call.1} parent=47 // pred_check_branch
          %294 = sbr.rel (%p292) target = $region56
        $region55: #{tpu_custom_call.1} parent=47 // pred_region
          %295 = dma.done [#allocation6], 2048
        $region56: #{tpu_custom_call.1} parent=47 // pred_fallthru
          _
        // Predicated region
        $region57: #{tpu_custom_call.1} parent=47 // pred_check
          %p296 = pneg %p151
        $region58: #{tpu_custom_call.1} parent=47 // pred_check_branch
          %298 = sbr.rel (%p296) target = $region60
        $region59: #{tpu_custom_call.1} parent=47 // pred_region
          %299 = dma.done [#allocation6], 2048
        $region60: #{tpu_custom_call.1} parent=47 // pred_fallthru
          _
        %s300 = sand.u32 %s33, 1
        %s301 = scalar_lea.sflag [#allocation3], %s300
        %s302 = sand.u32 %s33, 1
        %s303 = smul.addr %s302, 256
        %s304 = scalar_lea.vmem [#allocation2], %s303
        %p305 = pneg %p46
        %p306 = pneg %p43
        %p307 = pneg %p67
        %p308 = pneg %p64
        %p309 = pneg %p88
        %p310 = pneg %p85
        %p311 = pneg %p109
        %p312 = pneg %p106
        %p313 = pneg %p130
        %p314 = pneg %p127
        %p315 = pneg %p151
        %p316 = pneg %p148
        %p317 = pneg %p172
        %p318 = pneg %p169
        %p319 = pneg %p198
        %p320 = pneg %p195
        %s321 = sand.u32 %s185, 1
        %s322 = scalar_lea.sflag [#allocation4], %s321
        %s323 = sand.u32 %s185, 1
        %s324 = smul.addr %s323, 256
        %s325 = scalar_lea.vmem [#allocation8], %s324
        %s326 = smul.u32 32, %s25
        %s327 = smul.u32 32, %s25
        %v328 = vld [vmem:[%s287] sm:$0xff]
        %v329 = vld [vmem:[%s287 + $0x8] sm:$0xff]
        %v330 = vld [vmem:[%s287 + $0x10] sm:$0xff]
        %v331 = vld [vmem:[%s287 + $0x18] sm:$0xff]
        %v332 = vld [vmem:[%s287 + $0x20] sm:$0xff]
        %v333 = vld [vmem:[%s287 + $0x28] sm:$0xff]
        %v334 = vld [vmem:[%s287 + $0x30] sm:$0xff]
        %v335 = vld [vmem:[%s287 + $0x38] sm:$0xff]
        %v336 = vld [vmem:[%s287 + $0x40] sm:$0xff]
        %v337 = vld [vmem:[%s287 + $0x48] sm:$0xff]
        %v338 = vld [vmem:[%s287 + $0x50] sm:$0xff]
        %v339 = vld [vmem:[%s287 + $0x58] sm:$0xff]
        %v340 = vld [vmem:[%s287 + $0x60] sm:$0xff]
        %v341 = vld [vmem:[%s287 + $0x68] sm:$0xff]
        %v342 = vld [vmem:[%s287 + $0x70] sm:$0xff]
        %v343 = vld [vmem:[%s287 + $0x78] sm:$0xff]
        %v344 = vld [vmem:[%s287 + $0x80] sm:$0xff]
        %v345 = vld [vmem:[%s287 + $0x88] sm:$0xff]
        %v346 = vld [vmem:[%s287 + $0x90] sm:$0xff]
        %v347 = vld [vmem:[%s287 + $0x98] sm:$0xff]
        %v348 = vld [vmem:[%s287 + $0xa0] sm:$0xff]
        %v349 = vld [vmem:[%s287 + $0xa8] sm:$0xff]
        %v350 = vld [vmem:[%s287 + $0xb0] sm:$0xff]
        %v351 = vld [vmem:[%s287 + $0xb8] sm:$0xff]
        %v352 = vld [vmem:[%s287 + $0xc0] sm:$0xff]
        %v353 = vld [vmem:[%s287 + $0xc8] sm:$0xff]
        %v354 = vld [vmem:[%s287 + $0xd0] sm:$0xff]
        %v355 = vld [vmem:[%s287 + $0xd8] sm:$0xff]
        %v356 = vld [vmem:[%s287 + $0xe0] sm:$0xff]
        %v357 = vld [vmem:[%s287 + $0xe8] sm:$0xff]
        %v358 = vld [vmem:[%s287 + $0xf0] sm:$0xff]
        %v359 = vld [vmem:[%s287 + $0xf8] sm:$0xff]
        %v360 = vld [vmem:[#allocation5] sm:$0xff]
        %v361 = vld [vmem:[#allocation5 + $0x8] sm:$0xff]
        %v362 = vld [vmem:[#allocation5 + $0x10] sm:$0xff]
        %v363 = vld [vmem:[#allocation5 + $0x18] sm:$0xff]
        %v364 = vld [vmem:[#allocation5 + $0x20] sm:$0xff]
        %v365 = vld [vmem:[#allocation5 + $0x28] sm:$0xff]
        %v366 = vld [vmem:[#allocation5 + $0x30] sm:$0xff]
        %v367 = vld [vmem:[#allocation5 + $0x38] sm:$0xff]
        %v368 = vld [vmem:[#allocation5 + $0x40] sm:$0xff]
        %v369 = vld [vmem:[#allocation5 + $0x48] sm:$0xff]
        %v370 = vld [vmem:[#allocation5 + $0x50] sm:$0xff]
        %v371 = vld [vmem:[#allocation5 + $0x58] sm:$0xff]
        %v372 = vld [vmem:[#allocation5 + $0x60] sm:$0xff]
        %v373 = vld [vmem:[#allocation5 + $0x68] sm:$0xff]
        %v374 = vld [vmem:[#allocation5 + $0x70] sm:$0xff]
        %v375 = vld [vmem:[#allocation5 + $0x78] sm:$0xff]
        %v376 = vld [vmem:[%s2] sm:$0x1]
        %v378 = vlaneseq
        %v379 = vshrl.u32 %v378, 7
        %v380 = vsub.s32 0, %v379
        %v381 = vrot.slane %v376, %v380
        %383 = vmatprep.subr.mxu0 0.0
        %384 = vmatpush1.msra.mxu0 %v360
        %385 = vmatprep.subr.mxu0 0.0
        %386 = vmatpush1.msra.mxu0 %v361
        %387 = vmatprep.subr.mxu0 0.0
        %388 = vmatpush1.msra.mxu0 %v362
        %389 = vmatprep.subr.mxu0 0.0
        %390 = vmatpush1.msra.mxu0 %v363
        %391 = vmatprep.subr.mxu0 0.0
        %392 = vmatpush1.msra.mxu0 %v364
        %393 = vmatprep.subr.mxu0 0.0
        %394 = vmatpush1.msra.mxu0 %v365
        %395 = vmatprep.subr.mxu0 0.0
        %396 = vmatpush1.msra.mxu0 %v366
        %397 = vmatprep.subr.mxu0 0.0
        %398 = vmatpush1.msra.mxu0 %v367
        %399 = vmatprep.subr.mxu0 0.0
        %400 = vmatpush1.msra.mxu0 %v368
        %401 = vmatprep.subr.mxu0 0.0
        %402 = vmatpush1.msra.mxu0 %v369
        %403 = vmatprep.subr.mxu0 0.0
        %404 = vmatpush1.msra.mxu0 %v370
        %405 = vmatprep.subr.mxu0 0.0
        %406 = vmatpush1.msra.mxu0 %v371
        %407 = vmatprep.subr.mxu0 0.0
        %408 = vmatpush1.msra.mxu0 %v372
        %409 = vmatprep.subr.mxu0 0.0
        %410 = vmatpush1.msra.mxu0 %v373
        %411 = vmatprep.subr.mxu0 0.0
        %412 = vmatpush1.msra.mxu0 %v374
        %413 = vmatprep.subr.mxu0 0.0
        %414 = vmatpush1.msra.mxu0 %v375
        %415 = vmatprep.subr.mxu0 0.0
        %416 = vmatpush1.msra.mxu0 0.0
        %417 = vmatprep.subr.mxu0 0.0
        %418 = vmatpush1.msra.mxu0 0.0
        %419 = vmatprep.subr.mxu0 0.0
        %420 = vmatpush1.msra.mxu0 0.0
        %421 = vmatprep.subr.mxu0 0.0
        %422 = vmatpush1.msra.mxu0 0.0
        %423 = vmatprep.subr.mxu0 0.0
        %424 = vmatpush1.msra.mxu0 0.0
        %425 = vmatprep.subr.mxu0 0.0
        %426 = vmatpush1.msra.mxu0 0.0
        %427 = vmatprep.subr.mxu0 0.0
        %428 = vmatpush1.msra.mxu0 0.0
        %429 = vmatprep.subr.mxu0 0.0
        %430 = vmatpush1.msra.mxu0 0.0
        %431 = vmatprep.subr.mxu0 0.0
        %432 = vmatpush1.msra.mxu0 0.0
        %433 = vmatprep.subr.mxu0 0.0
        %434 = vmatpush1.msra.mxu0 0.0
        %435 = vmatprep.subr.mxu0 0.0
        %436 = vmatpush1.msra.mxu0 0.0
        %437 = vmatprep.subr.mxu0 0.0
        %438 = vmatpush1.msra.mxu0 0.0
        %439 = vmatprep.subr.mxu0 0.0
        %440 = vmatpush1.msra.mxu0 0.0
        %441 = vmatprep.subr.mxu0 0.0
        %442 = vmatpush1.msra.mxu0 0.0
        %443 = vmatprep.subr.mxu0 0.0
        %444 = vmatpush1.msra.mxu0 0.0
        %445 = vmatprep.subr.mxu0 0.0
        %446 = vmatpush1.msra.mxu0 0.0
        %447 = vmatprep.mubr.f32.mxu0 0.0
        %448 = vmatmul.mubr.f32.gmra.mrb[0].mxu0 %v328
        %v449 = vpop.f32.mrb[0].mxu0
        %v450 = vadd.f32 %v381, %v449
        %v451 = vpop.f32.mrb[0].mxu0
        %452 = vmatprep.mubr.f32.mxu0 0.0
        %453 = vmatmul.mubr.f32.gmra.mrb[0].mxu0 %v329
        %v454 = vpop.f32.mrb[0].mxu0
        %v455 = vadd.f32 %v381, %v454
        %v456 = vpop.f32.mrb[0].mxu0
        %457 = vmatprep.mubr.f32.mxu0 0.0
        %458 = vmatmul.mubr.f32.gmra.mrb[0].mxu0 %v330
        %v459 = vpop.f32.mrb[0].mxu0
        %v460 = vadd.f32 %v381, %v459
        %v461 = vpop.f32.mrb[0].mxu0
        %462 = vmatprep.mubr.f32.mxu0 0.0
        %463 = vmatmul.mubr.f32.gmra.mrb[0].mxu0 %v331
        %v464 = vpop.f32.mrb[0].mxu0
        %v465 = vadd.f32 %v381, %v464
        %v466 = vpop.f32.mrb[0].mxu0
        %467 = vmatprep.mubr.f32.mxu0 0.0
        %468 = vmatmul.mubr.f32.gmra.mrb[0].mxu0 %v332
        %v469 = vpop.f32.mrb[0].mxu0
        %v470 = vadd.f32 %v381, %v469
        %v471 = vpop.f32.mrb[0].mxu0
        %472 = vmatprep.mubr.f32.mxu0 0.0
        %473 = vmatmul.mubr.f32.gmra.mrb[0].mxu0 %v333
        %v474 = vpop.f32.mrb[0].mxu0
        %v475 = vadd.f32 %v381, %v474
        %v476 = vpop.f32.mrb[0].mxu0
        %477 = vmatprep.mubr.f32.mxu0 0.0
        %478 = vmatmul.mubr.f32.gmra.mrb[0].mxu0 %v334
        %v479 = vpop.f32.mrb[0].mxu0
        %v480 = vadd.f32 %v381, %v479
        %v481 = vpop.f32.mrb[0].mxu0
        %482 = vmatprep.mubr.f32.mxu0 0.0
        %483 = vmatmul.mubr.f32.gmra.mrb[0].mxu0 %v335
        %v484 = vpop.f32.mrb[0].mxu0
        %v485 = vadd.f32 %v381, %v484
        %v486 = vpop.f32.mrb[0].mxu0
        %487 = vmatprep.mubr.f32.mxu0 0.0
        %488 = vmatmul.mubr.f32.gmra.mrb[0].mxu0 %v336
        %v489 = vpop.f32.mrb[0].mxu0
        %v490 = vadd.f32 %v381, %v489
        %v491 = vpop.f32.mrb[0].mxu0
        %492 = vmatprep.mubr.f32.mxu0 0.0
        %493 = vmatmul.mubr.f32.gmra.mrb[0].mxu0 %v337
        %v494 = vpop.f32.mrb[0].mxu0
        %v495 = vadd.f32 %v381, %v494
        %v496 = vpop.f32.mrb[0].mxu0
        %497 = vmatprep.mubr.f32.mxu0 0.0
        %498 = vmatmul.mubr.f32.gmra.mrb[0].mxu0 %v338
        %v499 = vpop.f32.mrb[0].mxu0
        %v500 = vadd.f32 %v381, %v499
        %v501 = vpop.f32.mrb[0].mxu0
        %502 = vmatprep.mubr.f32.mxu0 0.0
        %503 = vmatmul.mubr.f32.gmra.mrb[0].mxu0 %v339
        %v504 = vpop.f32.mrb[0].mxu0
        %v505 = vadd.f32 %v381, %v504
        %v506 = vpop.f32.mrb[0].mxu0
        %507 = vmatprep.mubr.f32.mxu0 0.0
        %508 = vmatmul.mubr.f32.gmra.mrb[0].mxu0 %v340
        %v509 = vpop.f32.mrb[0].mxu0
        %v510 = vadd.f32 %v381, %v509
        %v511 = vpop.f32.mrb[0].mxu0
        %512 = vmatprep.mubr.f32.mxu0 0.0
        %513 = vmatmul.mubr.f32.gmra.mrb[0].mxu0 %v341
        %v514 = vpop.f32.mrb[0].mxu0
        %v515 = vadd.f32 %v381, %v514
        %v516 = vpop.f32.mrb[0].mxu0
        %517 = vmatprep.mubr.f32.mxu0 0.0
        %518 = vmatmul.mubr.f32.gmra.mrb[0].mxu0 %v342
        %v519 = vpop.f32.mrb[0].mxu0
        %v520 = vadd.f32 %v381, %v519
        %v521 = vpop.f32.mrb[0].mxu0
        %522 = vmatprep.mubr.f32.mxu0 0.0
        %523 = vmatmul.mubr.f32.gmra.mrb[0].mxu0 %v343
        %v524 = vpop.f32.mrb[0].mxu0
        %v525 = vadd.f32 %v381, %v524
        %v526 = vpop.f32.mrb[0].mxu0
        %527 = vmatprep.mubr.f32.mxu0 0.0
        %528 = vmatmul.mubr.f32.gmra.mrb[0].mxu0 %v344
        %v529 = vpop.f32.mrb[0].mxu0
        %v530 = vadd.f32 %v381, %v529
        %v531 = vpop.f32.mrb[0].mxu0
        %532 = vmatprep.mubr.f32.mxu0 0.0
        %533 = vmatmul.mubr.f32.gmra.mrb[0].mxu0 %v345
        %v534 = vpop.f32.mrb[0].mxu0
        %v535 = vadd.f32 %v381, %v534
        %v536 = vpop.f32.mrb[0].mxu0
        %537 = vmatprep.mubr.f32.mxu0 0.0
        %538 = vmatmul.mubr.f32.gmra.mrb[0].mxu0 %v346
        %v539 = vpop.f32.mrb[0].mxu0
        %v540 = vadd.f32 %v381, %v539
        %v541 = vpop.f32.mrb[0].mxu0
        %542 = vmatprep.mubr.f32.mxu0 0.0
        %543 = vmatmul.mubr.f32.gmra.mrb[0].mxu0 %v347
        %v544 = vpop.f32.mrb[0].mxu0
        %v545 = vadd.f32 %v381, %v544
        %v546 = vpop.f32.mrb[0].mxu0
        %547 = vmatprep.mubr.f32.mxu0 0.0
        %548 = vmatmul.mubr.f32.gmra.mrb[0].mxu0 %v348
        %v549 = vpop.f32.mrb[0].mxu0
        %v550 = vadd.f32 %v381, %v549
        %v551 = vpop.f32.mrb[0].mxu0
        %552 = vmatprep.mubr.f32.mxu0 0.0
        %553 = vmatmul.mubr.f32.gmra.mrb[0].mxu0 %v349
        %v554 = vpop.f32.mrb[0].mxu0
        %v555 = vadd.f32 %v381, %v554
        %v556 = vpop.f32.mrb[0].mxu0
        %557 = vmatprep.mubr.f32.mxu0 0.0
        %558 = vmatmul.mubr.f32.gmra.mrb[0].mxu0 %v350
        %v559 = vpop.f32.mrb[0].mxu0
        %v560 = vadd.f32 %v381, %v559
        %v561 = vpop.f32.mrb[0].mxu0
        %562 = vmatprep.mubr.f32.mxu0 0.0
        %563 = vmatmul.mubr.f32.gmra.mrb[0].mxu0 %v351
        %v564 = vpop.f32.mrb[0].mxu0
        %v565 = vadd.f32 %v381, %v564
        %v566 = vpop.f32.mrb[0].mxu0
        %567 = vmatprep.mubr.f32.mxu0 0.0
        %568 = vmatmul.mubr.f32.gmra.mrb[0].mxu0 %v352
        %v569 = vpop.f32.mrb[0].mxu0
        %v570 = vadd.f32 %v381, %v569
        %v571 = vpop.f32.mrb[0].mxu0
        %572 = vmatprep.mubr.f32.mxu0 0.0
        %573 = vmatmul.mubr.f32.gmra.mrb[0].mxu0 %v353
        %v574 = vpop.f32.mrb[0].mxu0
        %v575 = vadd.f32 %v381, %v574
        %v576 = vpop.f32.mrb[0].mxu0
        %577 = vmatprep.mubr.f32.mxu0 0.0
        %578 = vmatmul.mubr.f32.gmra.mrb[0].mxu0 %v354
        %v579 = vpop.f32.mrb[0].mxu0
        %v580 = vadd.f32 %v381, %v579
        %v581 = vpop.f32.mrb[0].mxu0
        %582 = vmatprep.mubr.f32.mxu0 0.0
        %583 = vmatmul.mubr.f32.gmra.mrb[0].mxu0 %v355
        %v584 = vpop.f32.mrb[0].mxu0
        %v585 = vadd.f32 %v381, %v584
        %v586 = vpop.f32.mrb[0].mxu0
        %587 = vmatprep.mubr.f32.mxu0 0.0
        %588 = vmatmul.mubr.f32.gmra.mrb[0].mxu0 %v356
        %v589 = vpop.f32.mrb[0].mxu0
        %v590 = vadd.f32 %v381, %v589
        %v591 = vpop.f32.mrb[0].mxu0
        %592 = vmatprep.mubr.f32.mxu0 0.0
        %593 = vmatmul.mubr.f32.gmra.mrb[0].mxu0 %v357
        %v594 = vpop.f32.mrb[0].mxu0
        %v595 = vadd.f32 %v381, %v594
        %v596 = vpop.f32.mrb[0].mxu0
        %597 = vmatprep.mubr.f32.mxu0 0.0
        %598 = vmatmul.mubr.f32.gmra.mrb[0].mxu0 %v358
        %v599 = vpop.f32.mrb[0].mxu0
        %v600 = vadd.f32 %v381, %v599
        %v601 = vpop.f32.mrb[0].mxu0
        %602 = vmatprep.mubr.f32.mxu0 0.0
        %603 = vmatmul.mubr.f32.gmra.mrb[0].mxu0 %v359
        %v604 = vpop.f32.mrb[0].mxu0
        %v605 = vadd.f32 %v381, %v604
        %v606 = vpop.f32.mrb[0].mxu0
        %607 = vdwg.mxu0
        %v608 = vld [vmem:[%s3] sm:$0x1]
        %v610 = vlaneseq
        %v611 = vshrl.u32 %v610, 7
        %v612 = vsub.s32 0, %v611
        %v613 = vrot.slane %v608, %v612
        %v615 = vmul.f32 %v450, %v613
        %v616 = vmul.f32 %v455, %v613
        %v617 = vmul.f32 %v460, %v613
        %v618 = vmul.f32 %v465, %v613
        %v619 = vmul.f32 %v470, %v613
        %v620 = vmul.f32 %v475, %v613
        %v621 = vmul.f32 %v480, %v613
        %v622 = vmul.f32 %v485, %v613
        %v623 = vmul.f32 %v490, %v613
        %v624 = vmul.f32 %v495, %v613
        %v625 = vmul.f32 %v500, %v613
        %v626 = vmul.f32 %v505, %v613
        %v627 = vmul.f32 %v510, %v613
        %v628 = vmul.f32 %v515, %v613
        %v629 = vmul.f32 %v520, %v613
        %v630 = vmul.f32 %v525, %v613
        %v631 = vmul.f32 %v530, %v613
        %v632 = vmul.f32 %v535, %v613
        %v633 = vmul.f32 %v540, %v613
        %v634 = vmul.f32 %v545, %v613
        %v635 = vmul.f32 %v550, %v613
        %v636 = vmul.f32 %v555, %v613
        %v637 = vmul.f32 %v560, %v613
        %v638 = vmul.f32 %v565, %v613
        %v639 = vmul.f32 %v570, %v613
        %v640 = vmul.f32 %v575, %v613
        %v641 = vmul.f32 %v580, %v613
        %v642 = vmul.f32 %v585, %v613
        %v643 = vmul.f32 %v590, %v613
        %v644 = vmul.f32 %v595, %v613
        %v645 = vmul.f32 %v600, %v613
        %v646 = vmul.f32 %v605, %v613
        %v647 = vld [vmem:[%s4] sm:$0x1]
        %v649 = vlaneseq
        %v650 = vshrl.u32 %v649, 7
        %v651 = vsub.s32 0, %v650
        %v652 = vrot.slane %v647, %v651
        %v654 = vadd.f32 %v615, %v652
        %v655 = vadd.f32 %v616, %v652
        %v656 = vadd.f32 %v617, %v652
        %v657 = vadd.f32 %v618, %v652
        %v658 = vadd.f32 %v619, %v652
        %v659 = vadd.f32 %v620, %v652
        %v660 = vadd.f32 %v621, %v652
        %v661 = vadd.f32 %v622, %v652
        %v662 = vadd.f32 %v623, %v652
        %v663 = vadd.f32 %v624, %v652
        %v664 = vadd.f32 %v625, %v652
        %v665 = vadd.f32 %v626, %v652
        %v666 = vadd.f32 %v627, %v652
        %v667 = vadd.f32 %v628, %v652
        %v668 = vadd.f32 %v629, %v652
        %v669 = vadd.f32 %v630, %v652
        %v670 = vadd.f32 %v631, %v652
        %v671 = vadd.f32 %v632, %v652
        %v672 = vadd.f32 %v633, %v652
        %v673 = vadd.f32 %v634, %v652
        %v674 = vadd.f32 %v635, %v652
        %v675 = vadd.f32 %v636, %v652
        %v676 = vadd.f32 %v637, %v652
        %v677 = vadd.f32 %v638, %v652
        %v678 = vadd.f32 %v639, %v652
        %v679 = vadd.f32 %v640, %v652
        %v680 = vadd.f32 %v641, %v652
        %v681 = vadd.f32 %v642, %v652
        %v682 = vadd.f32 %v643, %v652
        %v683 = vadd.f32 %v644, %v652
        %v684 = vadd.f32 %v645, %v652
        %v685 = vadd.f32 %v646, %v652
        %v686 = vmax.f32 %v654, 0.0
        %v687 = vmax.f32 %v655, 0.0
        %v688 = vmax.f32 %v656, 0.0
        %v689 = vmax.f32 %v657, 0.0
        %v690 = vmax.f32 %v658, 0.0
        %v691 = vmax.f32 %v659, 0.0
        %v692 = vmax.f32 %v660, 0.0
        %v693 = vmax.f32 %v661, 0.0
        %v694 = vmax.f32 %v662, 0.0
        %v695 = vmax.f32 %v663, 0.0
        %v696 = vmax.f32 %v664, 0.0
        %v697 = vmax.f32 %v665, 0.0
        %v698 = vmax.f32 %v666, 0.0
        %v699 = vmax.f32 %v667, 0.0
        %v700 = vmax.f32 %v668, 0.0
        %v701 = vmax.f32 %v669, 0.0
        %v702 = vmax.f32 %v670, 0.0
        %v703 = vmax.f32 %v671, 0.0
        %v704 = vmax.f32 %v672, 0.0
        %v705 = vmax.f32 %v673, 0.0
        %v706 = vmax.f32 %v674, 0.0
        %v707 = vmax.f32 %v675, 0.0
        %v708 = vmax.f32 %v676, 0.0
        %v709 = vmax.f32 %v677, 0.0
        %v710 = vmax.f32 %v678, 0.0
        %v711 = vmax.f32 %v679, 0.0
        %v712 = vmax.f32 %v680, 0.0
        %v713 = vmax.f32 %v681, 0.0
        %v714 = vmax.f32 %v682, 0.0
        %v715 = vmax.f32 %v683, 0.0
        %v716 = vmax.f32 %v684, 0.0
        %v717 = vmax.f32 %v685, 0.0
        %v718 = vld [vmem:[#allocation7] sm:$0xff]
        %v719 = vld [vmem:[#allocation7 + $0x8] sm:$0xff]
        %v720 = vld [vmem:[#allocation7 + $0x10] sm:$0xff]
        %v721 = vld [vmem:[#allocation7 + $0x18] sm:$0xff]
        %v722 = vld [vmem:[#allocation7 + $0x20] sm:$0xff]
        %v723 = vld [vmem:[#allocation7 + $0x28] sm:$0xff]
        %v724 = vld [vmem:[#allocation7 + $0x30] sm:$0xff]
        %v725 = vld [vmem:[#allocation7 + $0x38] sm:$0xff]
        %v726 = vld [vmem:[#allocation7 + $0x40] sm:$0xff]
        %v727 = vld [vmem:[#allocation7 + $0x48] sm:$0xff]
        %v728 = vld [vmem:[#allocation7 + $0x50] sm:$0xff]
        %v729 = vld [vmem:[#allocation7 + $0x58] sm:$0xff]
        %v730 = vld [vmem:[#allocation7 + $0x60] sm:$0xff]
        %v731 = vld [vmem:[#allocation7 + $0x68] sm:$0xff]
        %v732 = vld [vmem:[#allocation7 + $0x70] sm:$0xff]
        %v733 = vld [vmem:[#allocation7 + $0x78] sm:$0xff]
        %v734 = vld [vmem:[%s6] sm:$0x1]
        %v736 = vlaneseq
        %v737 = vshrl.u32 %v736, 7
        %v738 = vsub.s32 0, %v737
        %v739 = vrot.slane %v734, %v738
        %741 = vmatprep.subr.mxu0 0.0
        %742 = vmatpush1.msra.mxu0 %v718
        %743 = vmatprep.subr.mxu0 0.0
        %744 = vmatpush1.msra.mxu0 %v719
        %745 = vmatprep.subr.mxu0 0.0
        %746 = vmatpush1.msra.mxu0 %v720
        %747 = vmatprep.subr.mxu0 0.0
        %748 = vmatpush1.msra.mxu0 %v721
        %749 = vmatprep.subr.mxu0 0.0
        %750 = vmatpush1.msra.mxu0 %v722
        %751 = vmatprep.subr.mxu0 0.0
        %752 = vmatpush1.msra.mxu0 %v723
        %753 = vmatprep.subr.mxu0 0.0
        %754 = vmatpush1.msra.mxu0 %v724
        %755 = vmatprep.subr.mxu0 0.0
        %756 = vmatpush1.msra.mxu0 %v725
        %757 = vmatprep.subr.mxu0 0.0
        %758 = vmatpush1.msra.mxu0 %v726
        %759 = vmatprep.subr.mxu0 0.0
        %760 = vmatpush1.msra.mxu0 %v727
        %761 = vmatprep.subr.mxu0 0.0
        %762 = vmatpush1.msra.mxu0 %v728
        %763 = vmatprep.subr.mxu0 0.0
        %764 = vmatpush1.msra.mxu0 %v729
        %765 = vmatprep.subr.mxu0 0.0
        %766 = vmatpush1.msra.mxu0 %v730
        %767 = vmatprep.subr.mxu0 0.0
        %768 = vmatpush1.msra.mxu0 %v731
        %769 = vmatprep.subr.mxu0 0.0
        %770 = vmatpush1.msra.mxu0 %v732
        %771 = vmatprep.subr.mxu0 0.0
        %772 = vmatpush1.msra.mxu0 %v733
        %773 = vmatprep.subr.mxu0 0.0
        %774 = vmatpush1.msra.mxu0 0.0
        %775 = vmatprep.subr.mxu0 0.0
        %776 = vmatpush1.msra.mxu0 0.0
        %777 = vmatprep.subr.mxu0 0.0
        %778 = vmatpush1.msra.mxu0 0.0
        %779 = vmatprep.subr.mxu0 0.0
        %780 = vmatpush1.msra.mxu0 0.0
        %781 = vmatprep.subr.mxu0 0.0
        %782 = vmatpush1.msra.mxu0 0.0
        %783 = vmatprep.subr.mxu0 0.0
        %784 = vmatpush1.msra.mxu0 0.0
        %785 = vmatprep.subr.mxu0 0.0
        %786 = vmatpush1.msra.mxu0 0.0
        %787 = vmatprep.subr.mxu0 0.0
        %788 = vmatpush1.msra.mxu0 0.0
        %789 = vmatprep.subr.mxu0 0.0
        %790 = vmatpush1.msra.mxu0 0.0
        %791 = vmatprep.subr.mxu0 0.0
        %792 = vmatpush1.msra.mxu0 0.0
        %793 = vmatprep.subr.mxu0 0.0
        %794 = vmatpush1.msra.mxu0 0.0
        %795 = vmatprep.subr.mxu0 0.0
        %796 = vmatpush1.msra.mxu0 0.0
        %797 = vmatprep.subr.mxu0 0.0
        %798 = vmatpush1.msra.mxu0 0.0
        %799 = vmatprep.subr.mxu0 0.0
        %800 = vmatpush1.msra.mxu0 0.0
        %801 = vmatprep.subr.mxu0 0.0
        %802 = vmatpush1.msra.mxu0 0.0
        %803 = vmatprep.subr.mxu0 0.0
        %804 = vmatpush1.msra.mxu0 0.0
        %805 = vmatprep.mubr.f32.mxu0 0.0
        %806 = vmatmul.mubr.f32.gmra.mrb[0].mxu0 %v686
        %v807 = vpop.f32.mrb[0].mxu0
        %v808 = vadd.f32 %v739, %v807
        %v809 = vpop.f32.mrb[0].mxu0
        %810 = vmatprep.mubr.f32.mxu0 0.0
        %811 = vmatmul.mubr.f32.gmra.mrb[0].mxu0 %v687
        %v812 = vpop.f32.mrb[0].mxu0
        %v813 = vadd.f32 %v739, %v812
        %v814 = vpop.f32.mrb[0].mxu0
        %815 = vmatprep.mubr.f32.mxu0 0.0
        %816 = vmatmul.mubr.f32.gmra.mrb[0].mxu0 %v688
        %v817 = vpop.f32.mrb[0].mxu0
        %v818 = vadd.f32 %v739, %v817
        %v819 = vpop.f32.mrb[0].mxu0
        %820 = vmatprep.mubr.f32.mxu0 0.0
        %821 = vmatmul.mubr.f32.gmra.mrb[0].mxu0 %v689
        %v822 = vpop.f32.mrb[0].mxu0
        %v823 = vadd.f32 %v739, %v822
        %v824 = vpop.f32.mrb[0].mxu0
        %825 = vmatprep.mubr.f32.mxu0 0.0
        %826 = vmatmul.mubr.f32.gmra.mrb[0].mxu0 %v690
        %v827 = vpop.f32.mrb[0].mxu0
        %v828 = vadd.f32 %v739, %v827
        %v829 = vpop.f32.mrb[0].mxu0
        %830 = vmatprep.mubr.f32.mxu0 0.0
        %831 = vmatmul.mubr.f32.gmra.mrb[0].mxu0 %v691
        %v832 = vpop.f32.mrb[0].mxu0
        %v833 = vadd.f32 %v739, %v832
        %v834 = vpop.f32.mrb[0].mxu0
        %835 = vmatprep.mubr.f32.mxu0 0.0
        %836 = vmatmul.mubr.f32.gmra.mrb[0].mxu0 %v692
        %v837 = vpop.f32.mrb[0].mxu0
        %v838 = vadd.f32 %v739, %v837
        %v839 = vpop.f32.mrb[0].mxu0
        %840 = vmatprep.mubr.f32.mxu0 0.0
        %841 = vmatmul.mubr.f32.gmra.mrb[0].mxu0 %v693
        %v842 = vpop.f32.mrb[0].mxu0
        %v843 = vadd.f32 %v739, %v842
        %v844 = vpop.f32.mrb[0].mxu0
        %845 = vmatprep.mubr.f32.mxu0 0.0
        %846 = vmatmul.mubr.f32.gmra.mrb[0].mxu0 %v694
        %v847 = vpop.f32.mrb[0].mxu0
        %v848 = vadd.f32 %v739, %v847
        %v849 = vpop.f32.mrb[0].mxu0
        %850 = vmatprep.mubr.f32.mxu0 0.0
        %851 = vmatmul.mubr.f32.gmra.mrb[0].mxu0 %v695
        %v852 = vpop.f32.mrb[0].mxu0
        %v853 = vadd.f32 %v739, %v852
        %v854 = vpop.f32.mrb[0].mxu0
        %855 = vmatprep.mubr.f32.mxu0 0.0
        %856 = vmatmul.mubr.f32.gmra.mrb[0].mxu0 %v696
        %v857 = vpop.f32.mrb[0].mxu0
        %v858 = vadd.f32 %v739, %v857
        %v859 = vpop.f32.mrb[0].mxu0
        %860 = vmatprep.mubr.f32.mxu0 0.0
        %861 = vmatmul.mubr.f32.gmra.mrb[0].mxu0 %v697
        %v862 = vpop.f32.mrb[0].mxu0
        %v863 = vadd.f32 %v739, %v862
        %v864 = vpop.f32.mrb[0].mxu0
        %865 = vmatprep.mubr.f32.mxu0 0.0
        %866 = vmatmul.mubr.f32.gmra.mrb[0].mxu0 %v698
        %v867 = vpop.f32.mrb[0].mxu0
        %v868 = vadd.f32 %v739, %v867
        %v869 = vpop.f32.mrb[0].mxu0
        %870 = vmatprep.mubr.f32.mxu0 0.0
        %871 = vmatmul.mubr.f32.gmra.mrb[0].mxu0 %v699
        %v872 = vpop.f32.mrb[0].mxu0
        %v873 = vadd.f32 %v739, %v872
        %v874 = vpop.f32.mrb[0].mxu0
        %875 = vmatprep.mubr.f32.mxu0 0.0
        %876 = vmatmul.mubr.f32.gmra.mrb[0].mxu0 %v700
        %v877 = vpop.f32.mrb[0].mxu0
        %v878 = vadd.f32 %v739, %v877
        %v879 = vpop.f32.mrb[0].mxu0
        %880 = vmatprep.mubr.f32.mxu0 0.0
        %881 = vmatmul.mubr.f32.gmra.mrb[0].mxu0 %v701
        %v882 = vpop.f32.mrb[0].mxu0
        %v883 = vadd.f32 %v739, %v882
        %v884 = vpop.f32.mrb[0].mxu0
        %885 = vmatprep.mubr.f32.mxu0 0.0
        %886 = vmatmul.mubr.f32.gmra.mrb[0].mxu0 %v702
        %v887 = vpop.f32.mrb[0].mxu0
        %v888 = vadd.f32 %v739, %v887
        %v889 = vpop.f32.mrb[0].mxu0
        %890 = vmatprep.mubr.f32.mxu0 0.0
        %891 = vmatmul.mubr.f32.gmra.mrb[0].mxu0 %v703
        %v892 = vpop.f32.mrb[0].mxu0
        %v893 = vadd.f32 %v739, %v892
        %v894 = vpop.f32.mrb[0].mxu0
        %895 = vmatprep.mubr.f32.mxu0 0.0
        %896 = vmatmul.mubr.f32.gmra.mrb[0].mxu0 %v704
        %v897 = vpop.f32.mrb[0].mxu0
        %v898 = vadd.f32 %v739, %v897
        %v899 = vpop.f32.mrb[0].mxu0
        %900 = vmatprep.mubr.f32.mxu0 0.0
        %901 = vmatmul.mubr.f32.gmra.mrb[0].mxu0 %v705
        %v902 = vpop.f32.mrb[0].mxu0
        %v903 = vadd.f32 %v739, %v902
        %v904 = vpop.f32.mrb[0].mxu0
        %905 = vmatprep.mubr.f32.mxu0 0.0
        %906 = vmatmul.mubr.f32.gmra.mrb[0].mxu0 %v706
        %v907 = vpop.f32.mrb[0].mxu0
        %v908 = vadd.f32 %v739, %v907
        %v909 = vpop.f32.mrb[0].mxu0
        %910 = vmatprep.mubr.f32.mxu0 0.0
        %911 = vmatmul.mubr.f32.gmra.mrb[0].mxu0 %v707
        %v912 = vpop.f32.mrb[0].mxu0
        %v913 = vadd.f32 %v739, %v912
        %v914 = vpop.f32.mrb[0].mxu0
        %915 = vmatprep.mubr.f32.mxu0 0.0
        %916 = vmatmul.mubr.f32.gmra.mrb[0].mxu0 %v708
        %v917 = vpop.f32.mrb[0].mxu0
        %v918 = vadd.f32 %v739, %v917
        %v919 = vpop.f32.mrb[0].mxu0
        %920 = vmatprep.mubr.f32.mxu0 0.0
        %921 = vmatmul.mubr.f32.gmra.mrb[0].mxu0 %v709
        %v922 = vpop.f32.mrb[0].mxu0
        %v923 = vadd.f32 %v739, %v922
        %v924 = vpop.f32.mrb[0].mxu0
        %925 = vmatprep.mubr.f32.mxu0 0.0
        %926 = vmatmul.mubr.f32.gmra.mrb[0].mxu0 %v710
        %v927 = vpop.f32.mrb[0].mxu0
        %v928 = vadd.f32 %v739, %v927
        %v929 = vpop.f32.mrb[0].mxu0
        %930 = vmatprep.mubr.f32.mxu0 0.0
        %931 = vmatmul.mubr.f32.gmra.mrb[0].mxu0 %v711
        %v932 = vpop.f32.mrb[0].mxu0
        %v933 = vadd.f32 %v739, %v932
        %v934 = vpop.f32.mrb[0].mxu0
        %935 = vmatprep.mubr.f32.mxu0 0.0
        %936 = vmatmul.mubr.f32.gmra.mrb[0].mxu0 %v712
        %v937 = vpop.f32.mrb[0].mxu0
        %v938 = vadd.f32 %v739, %v937
        %v939 = vpop.f32.mrb[0].mxu0
        %940 = vmatprep.mubr.f32.mxu0 0.0
        %941 = vmatmul.mubr.f32.gmra.mrb[0].mxu0 %v713
        %v942 = vpop.f32.mrb[0].mxu0
        %v943 = vadd.f32 %v739, %v942
        %v944 = vpop.f32.mrb[0].mxu0
        %945 = vmatprep.mubr.f32.mxu0 0.0
        %946 = vmatmul.mubr.f32.gmra.mrb[0].mxu0 %v714
        %v947 = vpop.f32.mrb[0].mxu0
        %v948 = vadd.f32 %v739, %v947
        %v949 = vpop.f32.mrb[0].mxu0
        %950 = vmatprep.mubr.f32.mxu0 0.0
        %951 = vmatmul.mubr.f32.gmra.mrb[0].mxu0 %v715
        %v952 = vpop.f32.mrb[0].mxu0
        %v953 = vadd.f32 %v739, %v952
        %v954 = vpop.f32.mrb[0].mxu0
        %955 = vmatprep.mubr.f32.mxu0 0.0
        %956 = vmatmul.mubr.f32.gmra.mrb[0].mxu0 %v716
        %v957 = vpop.f32.mrb[0].mxu0
        %v958 = vadd.f32 %v739, %v957
        %v959 = vpop.f32.mrb[0].mxu0
        %960 = vmatprep.mubr.f32.mxu0 0.0
        %961 = vmatmul.mubr.f32.gmra.mrb[0].mxu0 %v717
        %v962 = vpop.f32.mrb[0].mxu0
        %v963 = vadd.f32 %v739, %v962
        %v964 = vpop.f32.mrb[0].mxu0
        %965 = vdwg.mxu0
        %v966 = vmul.f32 %v808, %v808
        %v967 = vmul.f32 %v813, %v813
        %v968 = vmul.f32 %v818, %v818
        %v969 = vmul.f32 %v823, %v823
        %v970 = vmul.f32 %v828, %v828
        %v971 = vmul.f32 %v833, %v833
        %v972 = vmul.f32 %v838, %v838
        %v973 = vmul.f32 %v843, %v843
        %v974 = vmul.f32 %v848, %v848
        %v975 = vmul.f32 %v853, %v853
        %v976 = vmul.f32 %v858, %v858
        %v977 = vmul.f32 %v863, %v863
        %v978 = vmul.f32 %v868, %v868
        %v979 = vmul.f32 %v873, %v873
        %v980 = vmul.f32 %v878, %v878
        %v981 = vmul.f32 %v883, %v883
        %v982 = vmul.f32 %v888, %v888
        %v983 = vmul.f32 %v893, %v893
        %v984 = vmul.f32 %v898, %v898
        %v985 = vmul.f32 %v903, %v903
        %v986 = vmul.f32 %v908, %v908
        %v987 = vmul.f32 %v913, %v913
        %v988 = vmul.f32 %v918, %v918
        %v989 = vmul.f32 %v923, %v923
        %v990 = vmul.f32 %v928, %v928
        %v991 = vmul.f32 %v933, %v933
        %v992 = vmul.f32 %v938, %v938
        %v993 = vmul.f32 %v943, %v943
        %v994 = vmul.f32 %v948, %v948
        %v995 = vmul.f32 %v953, %v953
        %v996 = vmul.f32 %v958, %v958
        %v997 = vmul.f32 %v963, %v963
        %998 = vadd.xlane.f32.xlu0 %v966
        %v999 = vpop.xlane.xlu0 %998
        %1000 = vadd.xlane.f32.xlu0 %v967
        %v1001 = vpop.xlane.xlu0 %1000
        %1002 = vadd.xlane.f32.xlu0 %v968
        %v1003 = vpop.xlane.xlu0 %1002
        %1004 = vadd.xlane.f32.xlu0 %v969
        %v1005 = vpop.xlane.xlu0 %1004
        %1006 = vadd.xlane.f32.xlu0 %v970
        %v1007 = vpop.xlane.xlu0 %1006
        %1008 = vadd.xlane.f32.xlu0 %v971
        %v1009 = vpop.xlane.xlu0 %1008
        %1010 = vadd.xlane.f32.xlu0 %v972
        %v1011 = vpop.xlane.xlu0 %1010
        %1012 = vadd.xlane.f32.xlu0 %v973
        %v1013 = vpop.xlane.xlu0 %1012
        %1014 = vadd.xlane.f32.xlu0 %v974
        %v1015 = vpop.xlane.xlu0 %1014
        %1016 = vadd.xlane.f32.xlu0 %v975
        %v1017 = vpop.xlane.xlu0 %1016
        %1018 = vadd.xlane.f32.xlu0 %v976
        %v1019 = vpop.xlane.xlu0 %1018
        %1020 = vadd.xlane.f32.xlu0 %v977
        %v1021 = vpop.xlane.xlu0 %1020
        %1022 = vadd.xlane.f32.xlu0 %v978
        %v1023 = vpop.xlane.xlu0 %1022
        %1024 = vadd.xlane.f32.xlu0 %v979
        %v1025 = vpop.xlane.xlu0 %1024
        %1026 = vadd.xlane.f32.xlu0 %v980
        %v1027 = vpop.xlane.xlu0 %1026
        %1028 = vadd.xlane.f32.xlu0 %v981
        %v1029 = vpop.xlane.xlu0 %1028
        %1030 = vadd.xlane.f32.xlu0 %v982
        %v1031 = vpop.xlane.xlu0 %1030
        %1032 = vadd.xlane.f32.xlu0 %v983
        %v1033 = vpop.xlane.xlu0 %1032
        %1034 = vadd.xlane.f32.xlu0 %v984
        %v1035 = vpop.xlane.xlu0 %1034
        %1036 = vadd.xlane.f32.xlu0 %v985
        %v1037 = vpop.xlane.xlu0 %1036
        %1038 = vadd.xlane.f32.xlu0 %v986
        %v1039 = vpop.xlane.xlu0 %1038
        %1040 = vadd.xlane.f32.xlu0 %v987
        %v1041 = vpop.xlane.xlu0 %1040
        %1042 = vadd.xlane.f32.xlu0 %v988
        %v1043 = vpop.xlane.xlu0 %1042
        %1044 = vadd.xlane.f32.xlu0 %v989
        %v1045 = vpop.xlane.xlu0 %1044
        %1046 = vadd.xlane.f32.xlu0 %v990
        %v1047 = vpop.xlane.xlu0 %1046
        %1048 = vadd.xlane.f32.xlu0 %v991
        %v1049 = vpop.xlane.xlu0 %1048
        %1050 = vadd.xlane.f32.xlu0 %v992
        %v1051 = vpop.xlane.xlu0 %1050
        %1052 = vadd.xlane.f32.xlu0 %v993
        %v1053 = vpop.xlane.xlu0 %1052
        %1054 = vadd.xlane.f32.xlu0 %v994
        %v1055 = vpop.xlane.xlu0 %1054
        %1056 = vadd.xlane.f32.xlu0 %v995
        %v1057 = vpop.xlane.xlu0 %1056
        %1058 = vadd.xlane.f32.xlu0 %v996
        %v1059 = vpop.xlane.xlu0 %1058
        %1060 = vadd.xlane.f32.xlu0 %v997
        %v1061 = vpop.xlane.xlu0 %1060
        %v1062 = vrsqrt.pop %v999
        %v1063 = vmul.f32 %v999, %v1062
        %vm1064 = vcmp.eq.f32.partialorder %v999, inf
        %v1065 = vsel %vm1064, %v999, %v1063
        %vm1066 = vcmp.eq.f32.partialorder %v999, 0.0
        %v1067 = vand.u32 %v999, 2147483648
        %v1068 = vsel %vm1066, %v1067, %v1065
        %v1069 = vrsqrt.pop %v1001
        %v1070 = vmul.f32 %v1001, %v1069
        %vm1071 = vcmp.eq.f32.partialorder %v1001, inf
        %v1072 = vsel %vm1071, %v1001, %v1070
        %vm1073 = vcmp.eq.f32.partialorder %v1001, 0.0
        %v1074 = vand.u32 %v1001, 2147483648
        %v1075 = vsel %vm1073, %v1074, %v1072
        %v1076 = vrsqrt.pop %v1003
        %v1077 = vmul.f32 %v1003, %v1076
        %vm1078 = vcmp.eq.f32.partialorder %v1003, inf
        %v1079 = vsel %vm1078, %v1003, %v1077
        %vm1080 = vcmp.eq.f32.partialorder %v1003, 0.0
        %v1081 = vand.u32 %v1003, 2147483648
        %v1082 = vsel %vm1080, %v1081, %v1079
        %v1083 = vrsqrt.pop %v1005
        %v1084 = vmul.f32 %v1005, %v1083
        %vm1085 = vcmp.eq.f32.partialorder %v1005, inf
        %v1086 = vsel %vm1085, %v1005, %v1084
        %vm1087 = vcmp.eq.f32.partialorder %v1005, 0.0
        %v1088 = vand.u32 %v1005, 2147483648
        %v1089 = vsel %vm1087, %v1088, %v1086
        %v1090 = vrsqrt.pop %v1007
        %v1091 = vmul.f32 %v1007, %v1090
        %vm1092 = vcmp.eq.f32.partialorder %v1007, inf
        %v1093 = vsel %vm1092, %v1007, %v1091
        %vm1094 = vcmp.eq.f32.partialorder %v1007, 0.0
        %v1095 = vand.u32 %v1007, 2147483648
        %v1096 = vsel %vm1094, %v1095, %v1093
        %v1097 = vrsqrt.pop %v1009
        %v1098 = vmul.f32 %v1009, %v1097
        %vm1099 = vcmp.eq.f32.partialorder %v1009, inf
        %v1100 = vsel %vm1099, %v1009, %v1098
        %vm1101 = vcmp.eq.f32.partialorder %v1009, 0.0
        %v1102 = vand.u32 %v1009, 2147483648
        %v1103 = vsel %vm1101, %v1102, %v1100
        %v1104 = vrsqrt.pop %v1011
        %v1105 = vmul.f32 %v1011, %v1104
        %vm1106 = vcmp.eq.f32.partialorder %v1011, inf
        %v1107 = vsel %vm1106, %v1011, %v1105
        %vm1108 = vcmp.eq.f32.partialorder %v1011, 0.0
        %v1109 = vand.u32 %v1011, 2147483648
        %v1110 = vsel %vm1108, %v1109, %v1107
        %v1111 = vrsqrt.pop %v1013
        %v1112 = vmul.f32 %v1013, %v1111
        %vm1113 = vcmp.eq.f32.partialorder %v1013, inf
        %v1114 = vsel %vm1113, %v1013, %v1112
        %vm1115 = vcmp.eq.f32.partialorder %v1013, 0.0
        %v1116 = vand.u32 %v1013, 2147483648
        %v1117 = vsel %vm1115, %v1116, %v1114
        %v1118 = vrsqrt.pop %v1015
        %v1119 = vmul.f32 %v1015, %v1118
        %vm1120 = vcmp.eq.f32.partialorder %v1015, inf
        %v1121 = vsel %vm1120, %v1015, %v1119
        %vm1122 = vcmp.eq.f32.partialorder %v1015, 0.0
        %v1123 = vand.u32 %v1015, 2147483648
        %v1124 = vsel %vm1122, %v1123, %v1121
        %v1125 = vrsqrt.pop %v1017
        %v1126 = vmul.f32 %v1017, %v1125
        %vm1127 = vcmp.eq.f32.partialorder %v1017, inf
        %v1128 = vsel %vm1127, %v1017, %v1126
        %vm1129 = vcmp.eq.f32.partialorder %v1017, 0.0
        %v1130 = vand.u32 %v1017, 2147483648
        %v1131 = vsel %vm1129, %v1130, %v1128
        %v1132 = vrsqrt.pop %v1019
        %v1133 = vmul.f32 %v1019, %v1132
        %vm1134 = vcmp.eq.f32.partialorder %v1019, inf
        %v1135 = vsel %vm1134, %v1019, %v1133
        %vm1136 = vcmp.eq.f32.partialorder %v1019, 0.0
        %v1137 = vand.u32 %v1019, 2147483648
        %v1138 = vsel %vm1136, %v1137, %v1135
        %v1139 = vrsqrt.pop %v1021
        %v1140 = vmul.f32 %v1021, %v1139
        %vm1141 = vcmp.eq.f32.partialorder %v1021, inf
        %v1142 = vsel %vm1141, %v1021, %v1140
        %vm1143 = vcmp.eq.f32.partialorder %v1021, 0.0
        %v1144 = vand.u32 %v1021, 2147483648
        %v1145 = vsel %vm1143, %v1144, %v1142
        %v1146 = vrsqrt.pop %v1023
        %v1147 = vmul.f32 %v1023, %v1146
        %vm1148 = vcmp.eq.f32.partialorder %v1023, inf
        %v1149 = vsel %vm1148, %v1023, %v1147
        %vm1150 = vcmp.eq.f32.partialorder %v1023, 0.0
        %v1151 = vand.u32 %v1023, 2147483648
        %v1152 = vsel %vm1150, %v1151, %v1149
        %v1153 = vrsqrt.pop %v1025
        %v1154 = vmul.f32 %v1025, %v1153
        %vm1155 = vcmp.eq.f32.partialorder %v1025, inf
        %v1156 = vsel %vm1155, %v1025, %v1154
        %vm1157 = vcmp.eq.f32.partialorder %v1025, 0.0
        %v1158 = vand.u32 %v1025, 2147483648
        %v1159 = vsel %vm1157, %v1158, %v1156
        %v1160 = vrsqrt.pop %v1027
        %v1161 = vmul.f32 %v1027, %v1160
        %vm1162 = vcmp.eq.f32.partialorder %v1027, inf
        %v1163 = vsel %vm1162, %v1027, %v1161
        %vm1164 = vcmp.eq.f32.partialorder %v1027, 0.0
        %v1165 = vand.u32 %v1027, 2147483648
        %v1166 = vsel %vm1164, %v1165, %v1163
        %v1167 = vrsqrt.pop %v1029
        %v1168 = vmul.f32 %v1029, %v1167
        %vm1169 = vcmp.eq.f32.partialorder %v1029, inf
        %v1170 = vsel %vm1169, %v1029, %v1168
        %vm1171 = vcmp.eq.f32.partialorder %v1029, 0.0
        %v1172 = vand.u32 %v1029, 2147483648
        %v1173 = vsel %vm1171, %v1172, %v1170
        %v1174 = vrsqrt.pop %v1031
        %v1175 = vmul.f32 %v1031, %v1174
        %vm1176 = vcmp.eq.f32.partialorder %v1031, inf
        %v1177 = vsel %vm1176, %v1031, %v1175
        %vm1178 = vcmp.eq.f32.partialorder %v1031, 0.0
        %v1179 = vand.u32 %v1031, 2147483648
        %v1180 = vsel %vm1178, %v1179, %v1177
        %v1181 = vrsqrt.pop %v1033
        %v1182 = vmul.f32 %v1033, %v1181
        %vm1183 = vcmp.eq.f32.partialorder %v1033, inf
        %v1184 = vsel %vm1183, %v1033, %v1182
        %vm1185 = vcmp.eq.f32.partialorder %v1033, 0.0
        %v1186 = vand.u32 %v1033, 2147483648
        %v1187 = vsel %vm1185, %v1186, %v1184
        %v1188 = vrsqrt.pop %v1035
        %v1189 = vmul.f32 %v1035, %v1188
        %vm1190 = vcmp.eq.f32.partialorder %v1035, inf
        %v1191 = vsel %vm1190, %v1035, %v1189
        %vm1192 = vcmp.eq.f32.partialorder %v1035, 0.0
        %v1193 = vand.u32 %v1035, 2147483648
        %v1194 = vsel %vm1192, %v1193, %v1191
        %v1195 = vrsqrt.pop %v1037
        %v1196 = vmul.f32 %v1037, %v1195
        %vm1197 = vcmp.eq.f32.partialorder %v1037, inf
        %v1198 = vsel %vm1197, %v1037, %v1196
        %vm1199 = vcmp.eq.f32.partialorder %v1037, 0.0
        %v1200 = vand.u32 %v1037, 2147483648
        %v1201 = vsel %vm1199, %v1200, %v1198
        %v1202 = vrsqrt.pop %v1039
        %v1203 = vmul.f32 %v1039, %v1202
        %vm1204 = vcmp.eq.f32.partialorder %v1039, inf
        %v1205 = vsel %vm1204, %v1039, %v1203
        %vm1206 = vcmp.eq.f32.partialorder %v1039, 0.0
        %v1207 = vand.u32 %v1039, 2147483648
        %v1208 = vsel %vm1206, %v1207, %v1205
        %v1209 = vrsqrt.pop %v1041
        %v1210 = vmul.f32 %v1041, %v1209
        %vm1211 = vcmp.eq.f32.partialorder %v1041, inf
        %v1212 = vsel %vm1211, %v1041, %v1210
        %vm1213 = vcmp.eq.f32.partialorder %v1041, 0.0
        %v1214 = vand.u32 %v1041, 2147483648
        %v1215 = vsel %vm1213, %v1214, %v1212
        %v1216 = vrsqrt.pop %v1043
        %v1217 = vmul.f32 %v1043, %v1216
        %vm1218 = vcmp.eq.f32.partialorder %v1043, inf
        %v1219 = vsel %vm1218, %v1043, %v1217
        %vm1220 = vcmp.eq.f32.partialorder %v1043, 0.0
        %v1221 = vand.u32 %v1043, 2147483648
        %v1222 = vsel %vm1220, %v1221, %v1219
        %v1223 = vrsqrt.pop %v1045
        %v1224 = vmul.f32 %v1045, %v1223
        %vm1225 = vcmp.eq.f32.partialorder %v1045, inf
        %v1226 = vsel %vm1225, %v1045, %v1224
        %vm1227 = vcmp.eq.f32.partialorder %v1045, 0.0
        %v1228 = vand.u32 %v1045, 2147483648
        %v1229 = vsel %vm1227, %v1228, %v1226
        %v1230 = vrsqrt.pop %v1047
        %v1231 = vmul.f32 %v1047, %v1230
        %vm1232 = vcmp.eq.f32.partialorder %v1047, inf
        %v1233 = vsel %vm1232, %v1047, %v1231
        %vm1234 = vcmp.eq.f32.partialorder %v1047, 0.0
        %v1235 = vand.u32 %v1047, 2147483648
        %v1236 = vsel %vm1234, %v1235, %v1233
        %v1237 = vrsqrt.pop %v1049
        %v1238 = vmul.f32 %v1049, %v1237
        %vm1239 = vcmp.eq.f32.partialorder %v1049, inf
        %v1240 = vsel %vm1239, %v1049, %v1238
        %vm1241 = vcmp.eq.f32.partialorder %v1049, 0.0
        %v1242 = vand.u32 %v1049, 2147483648
        %v1243 = vsel %vm1241, %v1242, %v1240
        %v1244 = vrsqrt.pop %v1051
        %v1245 = vmul.f32 %v1051, %v1244
        %vm1246 = vcmp.eq.f32.partialorder %v1051, inf
        %v1247 = vsel %vm1246, %v1051, %v1245
        %vm1248 = vcmp.eq.f32.partialorder %v1051, 0.0
        %v1249 = vand.u32 %v1051, 2147483648
        %v1250 = vsel %vm1248, %v1249, %v1247
        %v1251 = vrsqrt.pop %v1053
        %v1252 = vmul.f32 %v1053, %v1251
        %vm1253 = vcmp.eq.f32.partialorder %v1053, inf
        %v1254 = vsel %vm1253, %v1053, %v1252
        %vm1255 = vcmp.eq.f32.partialorder %v1053, 0.0
        %v1256 = vand.u32 %v1053, 2147483648
        %v1257 = vsel %vm1255, %v1256, %v1254
        %v1258 = vrsqrt.pop %v1055
        %v1259 = vmul.f32 %v1055, %v1258
        %vm1260 = vcmp.eq.f32.partialorder %v1055, inf
        %v1261 = vsel %vm1260, %v1055, %v1259
        %vm1262 = vcmp.eq.f32.partialorder %v1055, 0.0
        %v1263 = vand.u32 %v1055, 2147483648
        %v1264 = vsel %vm1262, %v1263, %v1261
        %v1265 = vrsqrt.pop %v1057
        %v1266 = vmul.f32 %v1057, %v1265
        %vm1267 = vcmp.eq.f32.partialorder %v1057, inf
        %v1268 = vsel %vm1267, %v1057, %v1266
        %vm1269 = vcmp.eq.f32.partialorder %v1057, 0.0
        %v1270 = vand.u32 %v1057, 2147483648
        %v1271 = vsel %vm1269, %v1270, %v1268
        %v1272 = vrsqrt.pop %v1059
        %v1273 = vmul.f32 %v1059, %v1272
        %vm1274 = vcmp.eq.f32.partialorder %v1059, inf
        %v1275 = vsel %vm1274, %v1059, %v1273
        %vm1276 = vcmp.eq.f32.partialorder %v1059, 0.0
        %v1277 = vand.u32 %v1059, 2147483648
        %v1278 = vsel %vm1276, %v1277, %v1275
        %v1279 = vrsqrt.pop %v1061
        %v1280 = vmul.f32 %v1061, %v1279
        %vm1281 = vcmp.eq.f32.partialorder %v1061, inf
        %v1282 = vsel %vm1281, %v1061, %v1280
        %vm1283 = vcmp.eq.f32.partialorder %v1061, 0.0
        %v1284 = vand.u32 %v1061, 2147483648
        %v1285 = vsel %vm1283, %v1284, %v1282
        %v1286 = vmax.f32 %v1068, 1e-12
        %v1287 = vmax.f32 %v1075, 1e-12
        %v1288 = vmax.f32 %v1082, 1e-12
        %v1289 = vmax.f32 %v1089, 1e-12
        %v1290 = vmax.f32 %v1096, 1e-12
        %v1291 = vmax.f32 %v1103, 1e-12
        %v1292 = vmax.f32 %v1110, 1e-12
        %v1293 = vmax.f32 %v1117, 1e-12
        %v1294 = vmax.f32 %v1124, 1e-12
        %v1295 = vmax.f32 %v1131, 1e-12
        %v1296 = vmax.f32 %v1138, 1e-12
        %v1297 = vmax.f32 %v1145, 1e-12
        %v1298 = vmax.f32 %v1152, 1e-12
        %v1299 = vmax.f32 %v1159, 1e-12
        %v1300 = vmax.f32 %v1166, 1e-12
        %v1301 = vmax.f32 %v1173, 1e-12
        %v1302 = vmax.f32 %v1180, 1e-12
        %v1303 = vmax.f32 %v1187, 1e-12
        %v1304 = vmax.f32 %v1194, 1e-12
        %v1305 = vmax.f32 %v1201, 1e-12
        %v1306 = vmax.f32 %v1208, 1e-12
        %v1307 = vmax.f32 %v1215, 1e-12
        %v1308 = vmax.f32 %v1222, 1e-12
        %v1309 = vmax.f32 %v1229, 1e-12
        %v1310 = vmax.f32 %v1236, 1e-12
        %v1311 = vmax.f32 %v1243, 1e-12
        %v1312 = vmax.f32 %v1250, 1e-12
        %v1313 = vmax.f32 %v1257, 1e-12
        %v1314 = vmax.f32 %v1264, 1e-12
        %v1315 = vmax.f32 %v1271, 1e-12
        %v1316 = vmax.f32 %v1278, 1e-12
        %v1317 = vmax.f32 %v1285, 1e-12
        %v1318 = vrcp.pop %v1286
        %v1319 = vmul.f32 1.0, %v1318
        %v1320 = vrcp.pop %v1287
        %v1321 = vmul.f32 1.0, %v1320
        %v1322 = vrcp.pop %v1288
        %v1323 = vmul.f32 1.0, %v1322
        %v1324 = vrcp.pop %v1289
        %v1325 = vmul.f32 1.0, %v1324
        %v1326 = vrcp.pop %v1290
        %v1327 = vmul.f32 1.0, %v1326
        %v1328 = vrcp.pop %v1291
        %v1329 = vmul.f32 1.0, %v1328
        %v1330 = vrcp.pop %v1292
        %v1331 = vmul.f32 1.0, %v1330
        %v1332 = vrcp.pop %v1293
        %v1333 = vmul.f32 1.0, %v1332
        %v1334 = vrcp.pop %v1294
        %v1335 = vmul.f32 1.0, %v1334
        %v1336 = vrcp.pop %v1295
        %v1337 = vmul.f32 1.0, %v1336
        %v1338 = vrcp.pop %v1296
        %v1339 = vmul.f32 1.0, %v1338
        %v1340 = vrcp.pop %v1297
        %v1341 = vmul.f32 1.0, %v1340
        %v1342 = vrcp.pop %v1298
        %v1343 = vmul.f32 1.0, %v1342
        %v1344 = vrcp.pop %v1299
        %v1345 = vmul.f32 1.0, %v1344
        %v1346 = vrcp.pop %v1300
        %v1347 = vmul.f32 1.0, %v1346
        %v1348 = vrcp.pop %v1301
        %v1349 = vmul.f32 1.0, %v1348
        %v1350 = vrcp.pop %v1302
        %v1351 = vmul.f32 1.0, %v1350
        %v1352 = vrcp.pop %v1303
        %v1353 = vmul.f32 1.0, %v1352
        %v1354 = vrcp.pop %v1304
        %v1355 = vmul.f32 1.0, %v1354
        %v1356 = vrcp.pop %v1305
        %v1357 = vmul.f32 1.0, %v1356
        %v1358 = vrcp.pop %v1306
        %v1359 = vmul.f32 1.0, %v1358
        %v1360 = vrcp.pop %v1307
        %v1361 = vmul.f32 1.0, %v1360
        %v1362 = vrcp.pop %v1308
        %v1363 = vmul.f32 1.0, %v1362
        %v1364 = vrcp.pop %v1309
        %v1365 = vmul.f32 1.0, %v1364
        %v1366 = vrcp.pop %v1310
        %v1367 = vmul.f32 1.0, %v1366
        %v1368 = vrcp.pop %v1311
        %v1369 = vmul.f32 1.0, %v1368
        %v1370 = vrcp.pop %v1312
        %v1371 = vmul.f32 1.0, %v1370
        %v1372 = vrcp.pop %v1313
        %v1373 = vmul.f32 1.0, %v1372
        %v1374 = vrcp.pop %v1314
        %v1375 = vmul.f32 1.0, %v1374
        %v1376 = vrcp.pop %v1315
        %v1377 = vmul.f32 1.0, %v1376
        %v1378 = vrcp.pop %v1316
        %v1379 = vmul.f32 1.0, %v1378
        %v1380 = vrcp.pop %v1317
        %v1381 = vmul.f32 1.0, %v1380
        %v1382 = vmul.f32 %v808, %v1319
        %v1383 = vmul.f32 %v813, %v1321
        %v1384 = vmul.f32 %v818, %v1323
        %v1385 = vmul.f32 %v823, %v1325
        %v1386 = vmul.f32 %v828, %v1327
        %v1387 = vmul.f32 %v833, %v1329
        %v1388 = vmul.f32 %v838, %v1331
        %v1389 = vmul.f32 %v843, %v1333
        %v1390 = vmul.f32 %v848, %v1335
        %v1391 = vmul.f32 %v853, %v1337
        %v1392 = vmul.f32 %v858, %v1339
        %v1393 = vmul.f32 %v863, %v1341
        %v1394 = vmul.f32 %v868, %v1343
        %v1395 = vmul.f32 %v873, %v1345
        %v1396 = vmul.f32 %v878, %v1347
        %v1397 = vmul.f32 %v883, %v1349
        %v1398 = vmul.f32 %v888, %v1351
        %v1399 = vmul.f32 %v893, %v1353
        %v1400 = vmul.f32 %v898, %v1355
        %v1401 = vmul.f32 %v903, %v1357
        %v1402 = vmul.f32 %v908, %v1359
        %v1403 = vmul.f32 %v913, %v1361
        %v1404 = vmul.f32 %v918, %v1363
        %v1405 = vmul.f32 %v923, %v1365
        %v1406 = vmul.f32 %v928, %v1367
        %v1407 = vmul.f32 %v933, %v1369
        %v1408 = vmul.f32 %v938, %v1371
        %v1409 = vmul.f32 %v943, %v1373
        %v1410 = vmul.f32 %v948, %v1375
        %v1411 = vmul.f32 %v953, %v1377
        %v1412 = vmul.f32 %v958, %v1379
        %v1413 = vmul.f32 %v963, %v1381
        %1414 = vst [vmem:[%s325] sm:$0xff] %v1382
        %1415 = vst [vmem:[%s325 + $0x8] sm:$0xff] %v1383
        %1416 = vst [vmem:[%s325 + $0x10] sm:$0xff] %v1384
        %1417 = vst [vmem:[%s325 + $0x18] sm:$0xff] %v1385
        %1418 = vst [vmem:[%s325 + $0x20] sm:$0xff] %v1386
        %1419 = vst [vmem:[%s325 + $0x28] sm:$0xff] %v1387
        %1420 = vst [vmem:[%s325 + $0x30] sm:$0xff] %v1388
        %1421 = vst [vmem:[%s325 + $0x38] sm:$0xff] %v1389
        %1422 = vst [vmem:[%s325 + $0x40] sm:$0xff] %v1390
        %1423 = vst [vmem:[%s325 + $0x48] sm:$0xff] %v1391
        %1424 = vst [vmem:[%s325 + $0x50] sm:$0xff] %v1392
        %1425 = vst [vmem:[%s325 + $0x58] sm:$0xff] %v1393
        %1426 = vst [vmem:[%s325 + $0x60] sm:$0xff] %v1394
        %1427 = vst [vmem:[%s325 + $0x68] sm:$0xff] %v1395
        %1428 = vst [vmem:[%s325 + $0x70] sm:$0xff] %v1396
        %1429 = vst [vmem:[%s325 + $0x78] sm:$0xff] %v1397
        %1430 = vst [vmem:[%s325 + $0x80] sm:$0xff] %v1398
        %1431 = vst [vmem:[%s325 + $0x88] sm:$0xff] %v1399
        %1432 = vst [vmem:[%s325 + $0x90] sm:$0xff] %v1400
        %1433 = vst [vmem:[%s325 + $0x98] sm:$0xff] %v1401
        %1434 = vst [vmem:[%s325 + $0xa0] sm:$0xff] %v1402
        %1435 = vst [vmem:[%s325 + $0xa8] sm:$0xff] %v1403
        %1436 = vst [vmem:[%s325 + $0xb0] sm:$0xff] %v1404
        %1437 = vst [vmem:[%s325 + $0xb8] sm:$0xff] %v1405
        %1438 = vst [vmem:[%s325 + $0xc0] sm:$0xff] %v1406
        %1439 = vst [vmem:[%s325 + $0xc8] sm:$0xff] %v1407
        %1440 = vst [vmem:[%s325 + $0xd0] sm:$0xff] %v1408
        %1441 = vst [vmem:[%s325 + $0xd8] sm:$0xff] %v1409
        %1442 = vst [vmem:[%s325 + $0xe0] sm:$0xff] %v1410
        %1443 = vst [vmem:[%s325 + $0xe8] sm:$0xff] %v1411
        %1444 = vst [vmem:[%s325 + $0xf0] sm:$0xff] %v1412
        %1445 = vst [vmem:[%s325 + $0xf8] sm:$0xff] %v1413
        %s1446 = sand.u32 %s185, 1
        %s1447 = scalar_lea.sflag [#allocation4], %s1446
        %s1448 = sand.u32 %s185, 1
        %s1449 = smul.addr %s1448, 256
        %s1450 = scalar_lea.vmem [#allocation8], %s1449
        // Predicated region
        $region61: #{tpu_custom_call.1} parent=47 // pred_check
          %p1451 = pneg %p195
        $region62: #{tpu_custom_call.1} parent=47 // pred_check_branch
          %1453 = sbr.rel (%p1451) target = $region64
        $region63: #{tpu_custom_call.1} parent=47 // pred_region
          %s1454 = smul.u32 32, %s25
          %s1456 = ssub.s32 4096, 4096
          %1457 = vsyncadd %s1447, %s1456
          %s1458 = smul.addr %s1454, 128
          %s1459 = scalar_lea.hbm %s7, %s1458
          %s1460 = sshll.u32 %s1450, 4
          %s1461 = int_to_ptr.vmem [resolvable:$true] %s1460
          %1466 = dma.vmem_to_hbm [thread:$0]  %s1461, 4096, %s1459, %s1447, 128, 128, 8
        $region64: #{tpu_custom_call.1} parent=47 // pred_fallthru
          _
      $region48: #{tpu_custom_call.1} parent=5 // pred_fallthru
        _
      %p1467 = scmp.le.s32.totalorder 2, %s20
      // Predicated region
      $region65: #{tpu_custom_call.1} parent=5 // pred_check
        %p1468 = pneg %p1467
      $region66: #{tpu_custom_call.1} parent=5 // pred_check_branch
        %1470 = sbr.rel (%p1468) target = $region68
      $region67: #{tpu_custom_call.1} parent=5 // pred_region
        %s1471 = ssub.s32 %s20, 2
        // Predicated region
        $region69: #{tpu_custom_call.1} parent=67 // pred_check
          %p1472 = pneg %p201
        $region70: #{tpu_custom_call.1} parent=67 // pred_check_branch
          %1474 = sbr.rel (%p1472) target = $region72
        $region71: #{tpu_custom_call.1} parent=67 // pred_region
          %s1475 = sand.u32 %s186, 1
          %s1476 = scalar_lea.sflag [#allocation4], %s1475
          %s1477 = sand.u32 %s186, 1
          %s1478 = smul.addr %s1477, 256
          %s1479 = scalar_lea.vmem [#allocation8], %s1478
          %1480 = dma.done %s1476, 4096
        $region72: #{tpu_custom_call.1} parent=67 // pred_fallthru
          _
      $region68: #{tpu_custom_call.1} parent=5 // pred_fallthru
        _
    $region6: #{tpu_custom_call.1} parent=1 // loop_footer
      %s24 = sadd.s32 1, %s20
    $region7: #{tpu_custom_call.1} parent=1 // loop_footer_branch
      %19 = sbr.rel target = $region3
    $region8: #{tpu_custom_call.1} parent=1 // loop_exit
      _
    %1481 = vsyncpa [#allocation3], 1
    %s1482 = scalar_lea.sflag [#allocation3], 1
    %1483 = vsyncpa %s1482, 1
    %1484 = vsyncpa [#allocation6], 1
    %1485 = vsyncpa [#allocation4], 1
    %s1486 = scalar_lea.sflag [#allocation4], 1
    %1487 = vsyncpa %s1486, 1

</llo_original>
